<compile_context>
chip_gen: v7x
topology: tpu7x:2x2x1
jax: 0.10.0
libtpu: 0.0.40
codegen_flags: <defaults>
</compile_context>

<pallas_src>
import functools

import jax
import jax.numpy as jnp
import numpy as np
from jax import lax
from jax.experimental import pallas as pl
from jax.experimental.pallas import tpu as pltpu


def s2s_kernel(enc_x_ref, dec_x_ref,
               w_ih_e_ref, w_hh_e_ref, b_e_ref,
               w_ih_d_ref, w_hh_d_ref, b_d_ref,
               w_out_ref, b_out_ref,
               out_ref,
               enc_proj_ref, dec_proj_ref, h_all_ref,
               *, n_steps, bp):
    d_hid = w_hh_e_ref.shape[0]          # padded hidden width (128-multiple)

    # ---- Hoisted input projections + fused biases: two big MXU calls -------
    # (T*Bp, d_char) @ (d_char, Hp) instead of 2*T tiny matmuls on the chain.
    enc_proj_ref[...] = (
        jnp.dot(enc_x_ref[...], w_ih_e_ref[...],
                preferred_element_type=jnp.float32) + b_e_ref[...])
    dec_proj_ref[...] = (
        jnp.dot(dec_x_ref[...], w_ih_d_ref[...],
                preferred_element_type=jnp.float32) + b_d_ref[...])

    # Hoist recurrent weight loads out of the loops.
    w_hh_e = w_hh_e_ref[...]
    w_hh_d = w_hh_d_ref[...]

    # ---- Encoder recurrence: only h @ W_hh + precomputed[t] per step -------
    def enc_step(t, h):
        r = pl.multiple_of(t * bp, bp)
        return jnp.tanh(enc_proj_ref[pl.ds(r, bp), :]
                        + jnp.dot(h, w_hh_e,
                                  preferred_element_type=jnp.float32))

    h0 = jnp.zeros((bp, d_hid), jnp.float32)
    hn = lax.fori_loop(0, n_steps, enc_step, h0, unroll=True)

    # ---- Decoder recurrence (teacher forced); stash h_t in VMEM scratch ----
    def dec_step(t, h):
        r = pl.multiple_of(t * bp, bp)
        h_new = jnp.tanh(dec_proj_ref[pl.ds(r, bp), :]
                         + jnp.dot(h, w_hh_d,
                                   preferred_element_type=jnp.float32))
        h_all_ref[pl.ds(r, bp), :] = h_new
        return h_new

    lax.fori_loop(0, n_steps, dec_step, hn, unroll=True)

    # ---- One batched output projection + vectorized log-softmax ------------
    logits = (jnp.dot(h_all_ref[...], w_out_ref[...],
                      preferred_element_type=jnp.float32) + b_out_ref[...])
    m = jnp.max(logits, axis=-1, keepdims=True)
    z = logits - m
    lse = jnp.log(jnp.sum(jnp.exp(z), axis=-1, keepdims=True))
    out_ref[...] = z - lse                       # (T*Bp, Vp), lane-dense store


def init_params(key, d_char, d_hid, len_voc):
    ks = jax.random.split(key, 11)
    u = lambda k, shape, scale: jax.random.uniform(
        k, shape, jnp.float32, minval=-scale, maxval=scale)
    s = 1.0 / np.sqrt(d_hid)
    return {
        "char_embs": jax.random.normal(ks[0], (len_voc, d_char), jnp.float32),
        # encoder RNN (PyTorch nn.RNN conventions: W_ih (d_hid, d_char), ...)
        "w_ih_e": u(ks[1], (d_hid, d_char), s),
        "w_hh_e": u(ks[2], (d_hid, d_hid), s),
        "b_ih_e": u(ks[3], (d_hid,), s),
        "b_hh_e": u(ks[4], (d_hid,), s),
        # decoder RNN
        "w_ih_d": u(ks[5], (d_hid, d_char), s),
        "w_hh_d": u(ks[6], (d_hid, d_hid), s),
        "b_ih_d": u(ks[7], (d_hid,), s),
        "b_hh_d": u(ks[8], (d_hid,), s),
        # output Linear (len_voc, d_hid) / (len_voc,)
        "w_out": u(ks[9], (len_voc, d_hid), s),
        "b_out": u(ks[10], (len_voc,), s),
    }


def s2s_forward(inputs, outputs, params):
    emb = params["char_embs"]                     # (len_voc, d_char)
    B, T = inputs.shape
    len_voc, d_char = emb.shape
    d_hid = params["w_hh_e"].shape[0]

    # ---- (8,128)-aligned padded sizes ---------------------------------------
    Bp = max(8, ((B + 7) // 8) * 8)               # sublane-aligned batch
    Hp = max(128, ((d_hid + 127) // 128) * 128)   # lane-aligned hidden
    Vp = max(128, ((len_voc + 127) // 128) * 128)  # lane-aligned vocab

    # ---- glue: embedding gathers + teacher-forced shift, time-major --------
    enc_x = jnp.transpose(jnp.take(emb, inputs, axis=0), (1, 0, 2))   # (T,B,dc)
    dec_e = jnp.transpose(jnp.take(emb, outputs, axis=0), (1, 0, 2))  # (T,B,dc)
    dec_x = jnp.concatenate(
        [jnp.zeros((1, B, d_char), jnp.float32), dec_e[:-1]], axis=0)  # (T,B,dc)

    # batch-pad with zeros and flatten time-major -> (T*Bp, d_char)
    pad_b = ((0, 0), (0, Bp - B), (0, 0))
    enc_x = jnp.pad(enc_x, pad_b).reshape(T * Bp, d_char)
    dec_x = jnp.pad(dec_x, pad_b).reshape(T * Bp, d_char)

    # kernel-friendly (right-multiply) weights, zero-padded to (8,128) tiles
    def pad2(w, rows, cols):
        return jnp.pad(w, ((0, rows - w.shape[0]), (0, cols - w.shape[1])))

    w_ih_e = pad2(params["w_ih_e"].T, d_char, Hp)            # (d_char, Hp)
    w_hh_e = pad2(params["w_hh_e"].T, Hp, Hp)                # (Hp, Hp)
    b_e = jnp.pad(params["b_ih_e"] + params["b_hh_e"],
                  (0, Hp - d_hid)).reshape(1, Hp)
    w_ih_d = pad2(params["w_ih_d"].T, d_char, Hp)
    w_hh_d = pad2(params["w_hh_d"].T, Hp, Hp)
    b_d = jnp.pad(params["b_ih_d"] + params["b_hh_d"],
                  (0, Hp - d_hid)).reshape(1, Hp)
    w_out = pad2(params["w_out"].T, Hp, Vp)                  # (Hp, Vp)
    # padded vocab columns get a huge negative bias -> exp underflows to 0,
    # so the log-softmax normalizer only sees the real len_voc columns.
    b_out = jnp.pad(params["b_out"], (0, Vp - len_voc),
                    constant_values=-1e9).reshape(1, Vp)

    logp = pl.pallas_call(
        functools.partial(s2s_kernel, n_steps=T, bp=Bp),
        out_shape=jax.ShapeDtypeStruct((T * Bp, Vp), jnp.float32),
        in_specs=[pl.BlockSpec(memory_space=pltpu.MemorySpace.VMEM)] * 10,
        out_specs=pl.BlockSpec(memory_space=pltpu.MemorySpace.VMEM),
        scratch_shapes=[pltpu.VMEM((T * Bp, Hp), jnp.float32)] * 3,
        # TODO(synk): for large len_voc/T/B add a grid over time/vocab tiles
        # (v7x has only 64 MiB VMEM) instead of keeping logits fully resident.
    )(enc_x, dec_x, w_ih_e, w_hh_e, b_e, w_ih_d, w_hh_d, b_d, w_out, b_out)

    # drop padding; PyTorch row ordering is b*T + t
    logp = logp.reshape(T, Bp, Vp)[:, :B, :len_voc]           # (T, B, len_voc)
    return jnp.transpose(logp, (1, 0, 2)).reshape(B * T, len_voc)


def s2s_reference(inputs, outputs, params):
    """Pure-JAX reference mirroring the PyTorch forward, for verification."""
    emb = params["char_embs"]
    B, T = inputs.shape
    len_voc, d_char = emb.shape
    d_hid = params["w_hh_e"].shape[0]

    h = jnp.zeros((B, d_hid), jnp.float32)
    enc_embs = jnp.take(emb, inputs, axis=0)          # (B, T, d_char)
    for t in range(T):
        h = jnp.tanh(enc_embs[:, t] @ params["w_ih_e"].T + params["b_ih_e"]
                     + h @ params["w_hh_e"].T + params["b_hh_e"])
    states = []
    for t in range(T):
        if t == 0:
            x_t = jnp.zeros((B, d_char), jnp.float32)
        else:
            x_t = jnp.take(emb, outputs[:, t - 1], axis=0)
        h = jnp.tanh(x_t @ params["w_ih_d"].T + params["b_ih_d"]
                     + h @ params["w_hh_d"].T + params["b_hh_d"])
        states.append(h)
    states = jnp.stack(states, axis=0)                # (T, B, d_hid)
    states = jnp.transpose(states, (1, 0, 2)).reshape(B * T, d_hid)
    logits = states @ params["w_out"].T + params["b_out"]
    return jax.nn.log_softmax(logits, axis=1)


if __name__ == "__main__":
    # Small shapes consistent with the module: batch=2, seq=8, d_char=16,
    # d_hid=32, len_voc=64.
    B, T, d_char, d_hid, len_voc = 2, 8, 16, 32, 64

    key = jax.random.PRNGKey(0)
    k_par, k_in, k_out = jax.random.split(key, 3)
    params = init_params(k_par, d_char, d_hid, len_voc)
    inputs = jax.random.randint(k_in, (B, T), 0, len_voc, dtype=jnp.int32)
    outputs = jax.random.randint(k_out, (B, T), 0, len_voc, dtype=jnp.int32)

    preds = jax.jit(s2s_forward)(inputs, outputs, params)
    preds = jax.block_until_ready(preds)

    ref = s2s_reference(inputs, outputs, params)
    assert preds.shape == (B * T, len_voc)
    np.testing.assert_allclose(np.asarray(preds), np.asarray(ref),
                               atol=2e-5, rtol=2e-5)
    print("KERNEL_OK")
</pallas_src>

<mosaic_0001>
module attributes {stable_mosaic.version = 11 : i64} {
  func.func @s2s_kernel(%arg0: memref<64x16xf32, #tpu.memory_space<vmem>>, %arg1: memref<64x16xf32, #tpu.memory_space<vmem>>, %arg2: memref<16x128xf32, #tpu.memory_space<vmem>>, %arg3: memref<128x128xf32, #tpu.memory_space<vmem>>, %arg4: memref<1x128xf32, #tpu.memory_space<vmem>>, %arg5: memref<16x128xf32, #tpu.memory_space<vmem>>, %arg6: memref<128x128xf32, #tpu.memory_space<vmem>>, %arg7: memref<1x128xf32, #tpu.memory_space<vmem>>, %arg8: memref<128x128xf32, #tpu.memory_space<vmem>>, %arg9: memref<1x128xf32, #tpu.memory_space<vmem>>, %arg10: memref<64x128xf32, #tpu.memory_space<vmem>>, %arg11: memref<64x128xf32, #tpu.memory_space<vmem>>, %arg12: memref<64x128xf32, #tpu.memory_space<vmem>>, %arg13: memref<64x128xf32, #tpu.memory_space<vmem>>) attributes {dimension_semantics = [], scalar_prefetch = 0 : i64, scratch_operands = 3 : i64, tpu.core_type = #tpu.core_type<tc>} {
    %c0 = arith.constant 0 : index
    %c0_0 = arith.constant 0 : index
    %0 = vector.load %arg0[%c0, %c0_0] : memref<64x16xf32, #tpu.memory_space<vmem>>, vector<64x16xf32>
    %c0_1 = arith.constant 0 : index
    %c0_2 = arith.constant 0 : index
    %1 = vector.load %arg2[%c0_1, %c0_2] : memref<16x128xf32, #tpu.memory_space<vmem>>, vector<16x128xf32>
    %cst = arith.constant dense<0.000000e+00> : vector<64x128xf32>
    %2 = tpu.matmul %0, %1, %cst {dimension_numbers = #tpu.dot_dimension_numbers<[1], [0], [0], [1], [0, 0, 1, 1], [], []>} : vector<64x16xf32>, vector<16x128xf32>, vector<64x128xf32> -> vector<64x128xf32>
    %c0_3 = arith.constant 0 : index
    %c0_4 = arith.constant 0 : index
    %3 = vector.load %arg4[%c0_3, %c0_4] : memref<1x128xf32, #tpu.memory_space<vmem>>, vector<1x128xf32>
    %4 = vector.broadcast %3 : vector<1x128xf32> to vector<64x128xf32>
    %5 = arith.addf %2, %4 : vector<64x128xf32>
    %c0_5 = arith.constant 0 : index
    %c0_6 = arith.constant 0 : index
    %6 = vector.load %arg11[%c0_5, %c0_6] : memref<64x128xf32, #tpu.memory_space<vmem>>, vector<64x128xf32>
    tpu.vector_store %arg11[%c0_5, %c0_6], %5 {strides = array<i32>} : memref<64x128xf32, #tpu.memory_space<vmem>>, vector<64x128xf32>,
    %c0_7 = arith.constant 0 : index
    %c0_8 = arith.constant 0 : index
    %7 = vector.load %arg1[%c0_7, %c0_8] : memref<64x16xf32, #tpu.memory_space<vmem>>, vector<64x16xf32>
    %c0_9 = arith.constant 0 : index
    %c0_10 = arith.constant 0 : index
    %8 = vector.load %arg5[%c0_9, %c0_10] : memref<16x128xf32, #tpu.memory_space<vmem>>, vector<16x128xf32>
    %cst_11 = arith.constant dense<0.000000e+00> : vector<64x128xf32>
    %9 = tpu.matmul %7, %8, %cst_11 {dimension_numbers = #tpu.dot_dimension_numbers<[1], [0], [0], [1], [0, 0, 1, 1], [], []>} : vector<64x16xf32>, vector<16x128xf32>, vector<64x128xf32> -> vector<64x128xf32>
    %c0_12 = arith.constant 0 : index
    %c0_13 = arith.constant 0 : index
    %10 = vector.load %arg7[%c0_12, %c0_13] : memref<1x128xf32, #tpu.memory_space<vmem>>, vector<1x128xf32>
    %11 = vector.broadcast %10 : vector<1x128xf32> to vector<64x128xf32>
    %12 = arith.addf %9, %11 : vector<64x128xf32>
    %c0_14 = arith.constant 0 : index
    %c0_15 = arith.constant 0 : index
    %13 = vector.load %arg12[%c0_14, %c0_15] : memref<64x128xf32, #tpu.memory_space<vmem>>, vector<64x128xf32>
    tpu.vector_store %arg12[%c0_14, %c0_15], %12 {strides = array<i32>} : memref<64x128xf32, #tpu.memory_space<vmem>>, vector<64x128xf32>,
    %c0_16 = arith.constant 0 : index
    %c0_17 = arith.constant 0 : index
    %14 = vector.load %arg3[%c0_16, %c0_17] : memref<128x128xf32, #tpu.memory_space<vmem>>, vector<128x128xf32>
    %c0_18 = arith.constant 0 : index
    %c0_19 = arith.constant 0 : index
    %15 = vector.load %arg6[%c0_18, %c0_19] : memref<128x128xf32, #tpu.memory_space<vmem>>, vector<128x128xf32>
    %cst_20 = arith.constant 0.000000e+00 : f32
    %16 = vector.broadcast %cst_20 : f32 to vector<8x128xf32>
    %c0_i32 = arith.constant 0 : i32
    %c8_i32 = arith.constant 8 : i32
    %17 = arith.muli %c0_i32, %c8_i32 : i32
    %18 = tpu.assume_multiple %17, 8 : i32
    %19 = arith.index_cast %18 : i32 to index
    %c0_21 = arith.constant 0 : index
    %20 = vector.load %arg11[%19, %c0_21] : memref<64x128xf32, #tpu.memory_space<vmem>>, vector<8x128xf32>
    %cst_22 = arith.constant dense<0.000000e+00> : vector<8x128xf32>
    %21 = tpu.matmul %16, %14, %cst_22 {dimension_numbers = #tpu.dot_dimension_numbers<[1], [0], [0], [1], [0, 0, 1, 1], [], []>} : vector<8x128xf32>, vector<128x128xf32>, vector<8x128xf32> -> vector<8x128xf32>
    %22 = arith.addf %20, %21 : vector<8x128xf32>
    %23 = math.tanh %22 : vector<8x128xf32>
    %c1_i32 = arith.constant 1 : i32
    %c8_i32_23 = arith.constant 8 : i32
    %24 = arith.muli %c1_i32, %c8_i32_23 : i32
    %25 = tpu.assume_multiple %24, 8 : i32
    %26 = arith.index_cast %25 : i32 to index
    %c0_24 = arith.constant 0 : index
    %27 = vector.load %arg11[%26, %c0_24] : memref<64x128xf32, #tpu.memory_space<vmem>>, vector<8x128xf32>
    %cst_25 = arith.constant dense<0.000000e+00> : vector<8x128xf32>
    %28 = tpu.matmul %23, %14, %cst_25 {dimension_numbers = #tpu.dot_dimension_numbers<[1], [0], [0], [1], [0, 0, 1, 1], [], []>} : vector<8x128xf32>, vector<128x128xf32>, vector<8x128xf32> -> vector<8x128xf32>
    %29 = arith.addf %27, %28 : vector<8x128xf32>
    %30 = math.tanh %29 : vector<8x128xf32>
    %c2_i32 = arith.constant 2 : i32
    %c8_i32_26 = arith.constant 8 : i32
    %31 = arith.muli %c2_i32, %c8_i32_26 : i32
    %32 = tpu.assume_multiple %31, 8 : i32
    %33 = arith.index_cast %32 : i32 to index
    %c0_27 = arith.constant 0 : index
    %34 = vector.load %arg11[%33, %c0_27] : memref<64x128xf32, #tpu.memory_space<vmem>>, vector<8x128xf32>
    %cst_28 = arith.constant dense<0.000000e+00> : vector<8x128xf32>
    %35 = tpu.matmul %30, %14, %cst_28 {dimension_numbers = #tpu.dot_dimension_numbers<[1], [0], [0], [1], [0, 0, 1, 1], [], []>} : vector<8x128xf32>, vector<128x128xf32>, vector<8x128xf32> -> vector<8x128xf32>
    %36 = arith.addf %34, %35 : vector<8x128xf32>
    %37 = math.tanh %36 : vector<8x128xf32>
    %c3_i32 = arith.constant 3 : i32
    %c8_i32_29 = arith.constant 8 : i32
    %38 = arith.muli %c3_i32, %c8_i32_29 : i32
    %39 = tpu.assume_multiple %38, 8 : i32
    %40 = arith.index_cast %39 : i32 to index
    %c0_30 = arith.constant 0 : index
    %41 = vector.load %arg11[%40, %c0_30] : memref<64x128xf32, #tpu.memory_space<vmem>>, vector<8x128xf32>
    %cst_31 = arith.constant dense<0.000000e+00> : vector<8x128xf32>
    %42 = tpu.matmul %37, %14, %cst_31 {dimension_numbers = #tpu.dot_dimension_numbers<[1], [0], [0], [1], [0, 0, 1, 1], [], []>} : vector<8x128xf32>, vector<128x128xf32>, vector<8x128xf32> -> vector<8x128xf32>
    %43 = arith.addf %41, %42 : vector<8x128xf32>
    %44 = math.tanh %43 : vector<8x128xf32>
    %c4_i32 = arith.constant 4 : i32
    %c8_i32_32 = arith.constant 8 : i32
    %45 = arith.muli %c4_i32, %c8_i32_32 : i32
    %46 = tpu.assume_multiple %45, 8 : i32
    %47 = arith.index_cast %46 : i32 to index
    %c0_33 = arith.constant 0 : index
    %48 = vector.load %arg11[%47, %c0_33] : memref<64x128xf32, #tpu.memory_space<vmem>>, vector<8x128xf32>
    %cst_34 = arith.constant dense<0.000000e+00> : vector<8x128xf32>
    %49 = tpu.matmul %44, %14, %cst_34 {dimension_numbers = #tpu.dot_dimension_numbers<[1], [0], [0], [1], [0, 0, 1, 1], [], []>} : vector<8x128xf32>, vector<128x128xf32>, vector<8x128xf32> -> vector<8x128xf32>
    %50 = arith.addf %48, %49 : vector<8x128xf32>
    %51 = math.tanh %50 : vector<8x128xf32>
    %c5_i32 = arith.constant 5 : i32
    %c8_i32_35 = arith.constant 8 : i32
    %52 = arith.muli %c5_i32, %c8_i32_35 : i32
    %53 = tpu.assume_multiple %52, 8 : i32
    %54 = arith.index_cast %53 : i32 to index
    %c0_36 = arith.constant 0 : index
    %55 = vector.load %arg11[%54, %c0_36] : memref<64x128xf32, #tpu.memory_space<vmem>>, vector<8x128xf32>
    %cst_37 = arith.constant dense<0.000000e+00> : vector<8x128xf32>
    %56 = tpu.matmul %51, %14, %cst_37 {dimension_numbers = #tpu.dot_dimension_numbers<[1], [0], [0], [1], [0, 0, 1, 1], [], []>} : vector<8x128xf32>, vector<128x128xf32>, vector<8x128xf32> -> vector<8x128xf32>
    %57 = arith.addf %55, %56 : vector<8x128xf32>
    %58 = math.tanh %57 : vector<8x128xf32>
    %c6_i32 = arith.constant 6 : i32
    %c8_i32_38 = arith.constant 8 : i32
    %59 = arith.muli %c6_i32, %c8_i32_38 : i32
    %60 = tpu.assume_multiple %59, 8 : i32
    %61 = arith.index_cast %60 : i32 to index
    %c0_39 = arith.constant 0 : index
    %62 = vector.load %arg11[%61, %c0_39] : memref<64x128xf32, #tpu.memory_space<vmem>>, vector<8x128xf32>
    %cst_40 = arith.constant dense<0.000000e+00> : vector<8x128xf32>
    %63 = tpu.matmul %58, %14, %cst_40 {dimension_numbers = #tpu.dot_dimension_numbers<[1], [0], [0], [1], [0, 0, 1, 1], [], []>} : vector<8x128xf32>, vector<128x128xf32>, vector<8x128xf32> -> vector<8x128xf32>
    %64 = arith.addf %62, %63 : vector<8x128xf32>
    %65 = math.tanh %64 : vector<8x128xf32>
    %c7_i32 = arith.constant 7 : i32
    %c8_i32_41 = arith.constant 8 : i32
    %66 = arith.muli %c7_i32, %c8_i32_41 : i32
    %67 = tpu.assume_multiple %66, 8 : i32
    %68 = arith.index_cast %67 : i32 to index
    %c0_42 = arith.constant 0 : index
    %69 = vector.load %arg11[%68, %c0_42] : memref<64x128xf32, #tpu.memory_space<vmem>>, vector<8x128xf32>
    %cst_43 = arith.constant dense<0.000000e+00> : vector<8x128xf32>
    %70 = tpu.matmul %65, %14, %cst_43 {dimension_numbers = #tpu.dot_dimension_numbers<[1], [0], [0], [1], [0, 0, 1, 1], [], []>} : vector<8x128xf32>, vector<128x128xf32>, vector<8x128xf32> -> vector<8x128xf32>
    %71 = arith.addf %69, %70 : vector<8x128xf32>
    %72 = math.tanh %71 : vector<8x128xf32>
    %c8_i32_44 = arith.constant 8 : i32
    %c0_i32_45 = arith.constant 0 : i32
    %c8_i32_46 = arith.constant 8 : i32
    %73 = arith.muli %c0_i32_45, %c8_i32_46 : i32
    %74 = tpu.assume_multiple %73, 8 : i32
    %75 = arith.index_cast %74 : i32 to index
    %c0_47 = arith.constant 0 : index
    %76 = vector.load %arg12[%75, %c0_47] : memref<64x128xf32, #tpu.memory_space<vmem>>, vector<8x128xf32>
    %cst_48 = arith.constant dense<0.000000e+00> : vector<8x128xf32>
    %77 = tpu.matmul %72, %15, %cst_48 {dimension_numbers = #tpu.dot_dimension_numbers<[1], [0], [0], [1], [0, 0, 1, 1], [], []>} : vector<8x128xf32>, vector<128x128xf32>, vector<8x128xf32> -> vector<8x128xf32>
    %78 = arith.addf %76, %77 : vector<8x128xf32>
    %79 = math.tanh %78 : vector<8x128xf32>
    %80 = arith.index_cast %74 : i32 to index
    %c0_49 = arith.constant 0 : index
    %81 = vector.load %arg13[%80, %c0_49] : memref<64x128xf32, #tpu.memory_space<vmem>>, vector<8x128xf32>
    tpu.vector_store %arg13[%80, %c0_49], %79 {strides = array<i32>} : memref<64x128xf32, #tpu.memory_space<vmem>>, vector<8x128xf32>,
    %c1_i32_50 = arith.constant 1 : i32
    %c8_i32_51 = arith.constant 8 : i32
    %82 = arith.muli %c1_i32_50, %c8_i32_51 : i32
    %83 = tpu.assume_multiple %82, 8 : i32
    %84 = arith.index_cast %83 : i32 to index
    %c0_52 = arith.constant 0 : index
    %85 = vector.load %arg12[%84, %c0_52] : memref<64x128xf32, #tpu.memory_space<vmem>>, vector<8x128xf32>
    %cst_53 = arith.constant dense<0.000000e+00> : vector<8x128xf32>
    %86 = tpu.matmul %79, %15, %cst_53 {dimension_numbers = #tpu.dot_dimension_numbers<[1], [0], [0], [1], [0, 0, 1, 1], [], []>} : vector<8x128xf32>, vector<128x128xf32>, vector<8x128xf32> -> vector<8x128xf32>
    %87 = arith.addf %85, %86 : vector<8x128xf32>
    %88 = math.tanh %87 : vector<8x128xf32>
    %89 = arith.index_cast %83 : i32 to index
    %c0_54 = arith.constant 0 : index
    %90 = vector.load %arg13[%89, %c0_54] : memref<64x128xf32, #tpu.memory_space<vmem>>, vector<8x128xf32>
    tpu.vector_store %arg13[%89, %c0_54], %88 {strides = array<i32>} : memref<64x128xf32, #tpu.memory_space<vmem>>, vector<8x128xf32>,
    %c2_i32_55 = arith.constant 2 : i32
    %c8_i32_56 = arith.constant 8 : i32
    %91 = arith.muli %c2_i32_55, %c8_i32_56 : i32
    %92 = tpu.assume_multiple %91, 8 : i32
    %93 = arith.index_cast %92 : i32 to index
    %c0_57 = arith.constant 0 : index
    %94 = vector.load %arg12[%93, %c0_57] : memref<64x128xf32, #tpu.memory_space<vmem>>, vector<8x128xf32>
    %cst_58 = arith.constant dense<0.000000e+00> : vector<8x128xf32>
    %95 = tpu.matmul %88, %15, %cst_58 {dimension_numbers = #tpu.dot_dimension_numbers<[1], [0], [0], [1], [0, 0, 1, 1], [], []>} : vector<8x128xf32>, vector<128x128xf32>, vector<8x128xf32> -> vector<8x128xf32>
    %96 = arith.addf %94, %95 : vector<8x128xf32>
    %97 = math.tanh %96 : vector<8x128xf32>
    %98 = arith.index_cast %92 : i32 to index
    %c0_59 = arith.constant 0 : index
    %99 = vector.load %arg13[%98, %c0_59] : memref<64x128xf32, #tpu.memory_space<vmem>>, vector<8x128xf32>
    tpu.vector_store %arg13[%98, %c0_59], %97 {strides = array<i32>} : memref<64x128xf32, #tpu.memory_space<vmem>>, vector<8x128xf32>,
    %c3_i32_60 = arith.constant 3 : i32
    %c8_i32_61 = arith.constant 8 : i32
    %100 = arith.muli %c3_i32_60, %c8_i32_61 : i32
    %101 = tpu.assume_multiple %100, 8 : i32
    %102 = arith.index_cast %101 : i32 to index
    %c0_62 = arith.constant 0 : index
    %103 = vector.load %arg12[%102, %c0_62] : memref<64x128xf32, #tpu.memory_space<vmem>>, vector<8x128xf32>
    %cst_63 = arith.constant dense<0.000000e+00> : vector<8x128xf32>
    %104 = tpu.matmul %97, %15, %cst_63 {dimension_numbers = #tpu.dot_dimension_numbers<[1], [0], [0], [1], [0, 0, 1, 1], [], []>} : vector<8x128xf32>, vector<128x128xf32>, vector<8x128xf32> -> vector<8x128xf32>
    %105 = arith.addf %103, %104 : vector<8x128xf32>
    %106 = math.tanh %105 : vector<8x128xf32>
    %107 = arith.index_cast %101 : i32 to index
    %c0_64 = arith.constant 0 : index
    %108 = vector.load %arg13[%107, %c0_64] : memref<64x128xf32, #tpu.memory_space<vmem>>, vector<8x128xf32>
    tpu.vector_store %arg13[%107, %c0_64], %106 {strides = array<i32>} : memref<64x128xf32, #tpu.memory_space<vmem>>, vector<8x128xf32>,
    %c4_i32_65 = arith.constant 4 : i32
    %c8_i32_66 = arith.constant 8 : i32
    %109 = arith.muli %c4_i32_65, %c8_i32_66 : i32
    %110 = tpu.assume_multiple %109, 8 : i32
    %111 = arith.index_cast %110 : i32 to index
    %c0_67 = arith.constant 0 : index
    %112 = vector.load %arg12[%111, %c0_67] : memref<64x128xf32, #tpu.memory_space<vmem>>, vector<8x128xf32>
    %cst_68 = arith.constant dense<0.000000e+00> : vector<8x128xf32>
    %113 = tpu.matmul %106, %15, %cst_68 {dimension_numbers = #tpu.dot_dimension_numbers<[1], [0], [0], [1], [0, 0, 1, 1], [], []>} : vector<8x128xf32>, vector<128x128xf32>, vector<8x128xf32> -> vector<8x128xf32>
    %114 = arith.addf %112, %113 : vector<8x128xf32>
    %115 = math.tanh %114 : vector<8x128xf32>
    %116 = arith.index_cast %110 : i32 to index
    %c0_69 = arith.constant 0 : index
    %117 = vector.load %arg13[%116, %c0_69] : memref<64x128xf32, #tpu.memory_space<vmem>>, vector<8x128xf32>
    tpu.vector_store %arg13[%116, %c0_69], %115 {strides = array<i32>} : memref<64x128xf32, #tpu.memory_space<vmem>>, vector<8x128xf32>,
    %c5_i32_70 = arith.constant 5 : i32
    %c8_i32_71 = arith.constant 8 : i32
    %118 = arith.muli %c5_i32_70, %c8_i32_71 : i32
    %119 = tpu.assume_multiple %118, 8 : i32
    %120 = arith.index_cast %119 : i32 to index
    %c0_72 = arith.constant 0 : index
    %121 = vector.load %arg12[%120, %c0_72] : memref<64x128xf32, #tpu.memory_space<vmem>>, vector<8x128xf32>
    %cst_73 = arith.constant dense<0.000000e+00> : vector<8x128xf32>
    %122 = tpu.matmul %115, %15, %cst_73 {dimension_numbers = #tpu.dot_dimension_numbers<[1], [0], [0], [1], [0, 0, 1, 1], [], []>} : vector<8x128xf32>, vector<128x128xf32>, vector<8x128xf32> -> vector<8x128xf32>
    %123 = arith.addf %121, %122 : vector<8x128xf32>
    %124 = math.tanh %123 : vector<8x128xf32>
    %125 = arith.index_cast %119 : i32 to index
    %c0_74 = arith.constant 0 : index
    %126 = vector.load %arg13[%125, %c0_74] : memref<64x128xf32, #tpu.memory_space<vmem>>, vector<8x128xf32>
    tpu.vector_store %arg13[%125, %c0_74], %124 {strides = array<i32>} : memref<64x128xf32, #tpu.memory_space<vmem>>, vector<8x128xf32>,
    %c6_i32_75 = arith.constant 6 : i32
    %c8_i32_76 = arith.constant 8 : i32
    %127 = arith.muli %c6_i32_75, %c8_i32_76 : i32
    %128 = tpu.assume_multiple %127, 8 : i32
    %129 = arith.index_cast %128 : i32 to index
    %c0_77 = arith.constant 0 : index
    %130 = vector.load %arg12[%129, %c0_77] : memref<64x128xf32, #tpu.memory_space<vmem>>, vector<8x128xf32>
    %cst_78 = arith.constant dense<0.000000e+00> : vector<8x128xf32>
    %131 = tpu.matmul %124, %15, %cst_78 {dimension_numbers = #tpu.dot_dimension_numbers<[1], [0], [0], [1], [0, 0, 1, 1], [], []>} : vector<8x128xf32>, vector<128x128xf32>, vector<8x128xf32> -> vector<8x128xf32>
    %132 = arith.addf %130, %131 : vector<8x128xf32>
    %133 = math.tanh %132 : vector<8x128xf32>
    %134 = arith.index_cast %128 : i32 to index
    %c0_79 = arith.constant 0 : index
    %135 = vector.load %arg13[%134, %c0_79] : memref<64x128xf32, #tpu.memory_space<vmem>>, vector<8x128xf32>
    tpu.vector_store %arg13[%134, %c0_79], %133 {strides = array<i32>} : memref<64x128xf32, #tpu.memory_space<vmem>>, vector<8x128xf32>,
    %c7_i32_80 = arith.constant 7 : i32
    %c8_i32_81 = arith.constant 8 : i32
    %136 = arith.muli %c7_i32_80, %c8_i32_81 : i32
    %137 = tpu.assume_multiple %136, 8 : i32
    %138 = arith.index_cast %137 : i32 to index
    %c0_82 = arith.constant 0 : index
    %139 = vector.load %arg12[%138, %c0_82] : memref<64x128xf32, #tpu.memory_space<vmem>>, vector<8x128xf32>
    %cst_83 = arith.constant dense<0.000000e+00> : vector<8x128xf32>
    %140 = tpu.matmul %133, %15, %cst_83 {dimension_numbers = #tpu.dot_dimension_numbers<[1], [0], [0], [1], [0, 0, 1, 1], [], []>} : vector<8x128xf32>, vector<128x128xf32>, vector<8x128xf32> -> vector<8x128xf32>
    %141 = arith.addf %139, %140 : vector<8x128xf32>
    %142 = math.tanh %141 : vector<8x128xf32>
    %143 = arith.index_cast %137 : i32 to index
    %c0_84 = arith.constant 0 : index
    %144 = vector.load %arg13[%143, %c0_84] : memref<64x128xf32, #tpu.memory_space<vmem>>, vector<8x128xf32>
    tpu.vector_store %arg13[%143, %c0_84], %142 {strides = array<i32>} : memref<64x128xf32, #tpu.memory_space<vmem>>, vector<8x128xf32>,
    %c8_i32_85 = arith.constant 8 : i32
    %c0_86 = arith.constant 0 : index
    %c0_87 = arith.constant 0 : index
    %145 = vector.load %arg13[%c0_86, %c0_87] : memref<64x128xf32, #tpu.memory_space<vmem>>, vector<64x128xf32>
    %c0_88 = arith.constant 0 : index
    %c0_89 = arith.constant 0 : index
    %146 = vector.load %arg8[%c0_88, %c0_89] : memref<128x128xf32, #tpu.memory_space<vmem>>, vector<128x128xf32>
    %cst_90 = arith.constant dense<0.000000e+00> : vector<64x128xf32>
    %147 = tpu.matmul %145, %146, %cst_90 {dimension_numbers = #tpu.dot_dimension_numbers<[1], [0], [0], [1], [0, 0, 1, 1], [], []>} : vector<64x128xf32>, vector<128x128xf32>, vector<64x128xf32> -> vector<64x128xf32>
    %c0_91 = arith.constant 0 : index
    %c0_92 = arith.constant 0 : index
    %148 = vector.load %arg9[%c0_91, %c0_92] : memref<1x128xf32, #tpu.memory_space<vmem>>, vector<1x128xf32>
    %149 = vector.broadcast %148 : vector<1x128xf32> to vector<64x128xf32>
    %150 = arith.addf %147, %149 : vector<64x128xf32>
    %cst_93 = arith.constant dense<0xFF800000> : vector<64xf32>
    %151 = vector.multi_reduction <maximumf>, %150, %cst_93 [1] : vector<64x128xf32> to vector<64xf32>
    %152 = vector.shape_cast %151 : vector<64xf32> to vector<64x1xf32>
    %153 = vector.broadcast %152 : vector<64x1xf32> to vector<64x128xf32>
    %154 = arith.subf %150, %153 : vector<64x128xf32>
    %155 = math.exp %154 : vector<64x128xf32>
    %cst_94 = arith.constant dense<0.000000e+00> : vector<64xf32>
    %156 = vector.multi_reduction <add>, %155, %cst_94 [1] : vector<64x128xf32> to vector<64xf32>
    %157 = vector.shape_cast %156 : vector<64xf32> to vector<64x1xf32>
    %158 = math.log %157 : vector<64x1xf32>
    %159 = vector.broadcast %158 : vector<64x1xf32> to vector<64x128xf32>
    %160 = arith.subf %154, %159 : vector<64x128xf32>
    %c0_95 = arith.constant 0 : index
    %c0_96 = arith.constant 0 : index
    %161 = vector.load %arg10[%c0_95, %c0_96] : memref<64x128xf32, #tpu.memory_space<vmem>>, vector<64x128xf32>
    tpu.vector_store %arg10[%c0_95, %c0_96], %160 {strides = array<i32>} : memref<64x128xf32, #tpu.memory_space<vmem>>, vector<64x128xf32>,
    return
  }
}

</mosaic_0001>

<llo_original>
// kernel: s2s_forward.1
$region0: #{s2s_forward.1}
  #allocation0 [shape = 'u32[]', space=smem, size = 0x4, offset = 0x4, fixed_abs, tag = 'smem constant byte address 0x4 - core index']
  #allocation1 [shape = 'u32[144,128]{1,0:T(1,128)}', space=vmem, size = 0x12000, scoped, tag = 'internal scratch']
  #allocation2 [shape = 'f32[64,128]{1,0:T(8,128)}', space=vmem, size = 0x8000, scoped, tag = 'scratch operand']
  #allocation3 [shape = 'f32[64,128]{1,0:T(8,128)}', space=vmem, size = 0x8000, scoped, tag = 'scratch operand']
  #allocation4 [shape = 'f32[64,128]{1,0:T(8,128)}', space=vmem, size = 0x8000, scoped, tag = 'scratch operand']
  %s0 = inlined_call_operand.vmem [shape: f32[64,16], index: 0, kind: input, shape index: {}]
  %s1 = inlined_call_operand.vmem [shape: f32[64,16], index: 1, kind: input, shape index: {}]
  %s2 = inlined_call_operand.vmem [shape: f32[16,128], index: 2, kind: input, shape index: {}]
  %s3 = inlined_call_operand.vmem [shape: f32[128,128], index: 3, kind: input, shape index: {}]
  %s4 = inlined_call_operand.vmem [shape: f32[1,128], index: 4, kind: input, shape index: {}]
  %s5 = inlined_call_operand.vmem [shape: f32[16,128], index: 5, kind: input, shape index: {}]
  %s6 = inlined_call_operand.vmem [shape: f32[128,128], index: 6, kind: input, shape index: {}]
  %s7 = inlined_call_operand.vmem [shape: f32[1,128], index: 7, kind: input, shape index: {}]
  %s8 = inlined_call_operand.vmem [shape: f32[128,128], index: 8, kind: input, shape index: {}]
  %s9 = inlined_call_operand.vmem [shape: f32[1,128], index: 9, kind: input, shape index: {}]
  %s10 = inlined_call_operand.vmem [shape: f32[64,128], index: 10, kind: output, shape index: {}]
  %s11 = sld [smem:[#allocation0]]
  $region50: #{s2s_forward.1} parent=0
    _
  %s13 = ssub.s32 1, %s11
  %s14 = scalar_select 0, %s13, %s11
  // Predicated region
  $region2: #{s2s_forward.1} parent=0 // pred_check
    _
  $region3: #{s2s_forward.1} parent=0 // pred_check_branch
    %16 = sbr.rel (0) target = $region5
  $region4: #{s2s_forward.1} parent=0 // pred_region
    _
  $region5: #{s2s_forward.1} parent=0 // pred_fallthru
    _
  // Predicated region
  $region6: #{s2s_forward.1} parent=0 // pred_check
    _
  $region7: #{s2s_forward.1} parent=0 // pred_check_branch
    %18 = sbr.rel (0) target = $region9
  $region8: #{s2s_forward.1} parent=0 // pred_region
    _
  $region9: #{s2s_forward.1} parent=0 // pred_fallthru
    _
  // Predicated region
  $region10: #{s2s_forward.1} parent=0 // pred_check
    _
  $region11: #{s2s_forward.1} parent=0 // pred_check_branch
    %20 = sbr.rel (0) target = $region13
  $region12: #{s2s_forward.1} parent=0 // pred_region
    _
  $region13: #{s2s_forward.1} parent=0 // pred_fallthru
    _
  // Predicated region
  $region14: #{s2s_forward.1} parent=0 // pred_check
    _
  $region15: #{s2s_forward.1} parent=0 // pred_check_branch
    %22 = sbr.rel (0) target = $region17
  $region16: #{s2s_forward.1} parent=0 // pred_region
    _
  $region17: #{s2s_forward.1} parent=0 // pred_fallthru
    _
  // Predicated region
  $region18: #{s2s_forward.1} parent=0 // pred_check
    _
  $region19: #{s2s_forward.1} parent=0 // pred_check_branch
    %24 = sbr.rel (0) target = $region21
  $region20: #{s2s_forward.1} parent=0 // pred_region
    _
  $region21: #{s2s_forward.1} parent=0 // pred_fallthru
    _
  // Predicated region
  $region22: #{s2s_forward.1} parent=0 // pred_check
    _
  $region23: #{s2s_forward.1} parent=0 // pred_check_branch
    %26 = sbr.rel (0) target = $region25
  $region24: #{s2s_forward.1} parent=0 // pred_region
    _
  $region25: #{s2s_forward.1} parent=0 // pred_fallthru
    _
  // Predicated region
  $region26: #{s2s_forward.1} parent=0 // pred_check
    _
  $region27: #{s2s_forward.1} parent=0 // pred_check_branch
    %28 = sbr.rel (0) target = $region29
  $region28: #{s2s_forward.1} parent=0 // pred_region
    _
  $region29: #{s2s_forward.1} parent=0 // pred_fallthru
    _
  // Predicated region
  $region30: #{s2s_forward.1} parent=0 // pred_check
    _
  $region31: #{s2s_forward.1} parent=0 // pred_check_branch
    %30 = sbr.rel (0) target = $region33
  $region32: #{s2s_forward.1} parent=0 // pred_region
    _
  $region33: #{s2s_forward.1} parent=0 // pred_fallthru
    _
  // Predicated region
  $region34: #{s2s_forward.1} parent=0 // pred_check
    _
  $region35: #{s2s_forward.1} parent=0 // pred_check_branch
    %32 = sbr.rel (0) target = $region37
  $region36: #{s2s_forward.1} parent=0 // pred_region
    _
  $region37: #{s2s_forward.1} parent=0 // pred_fallthru
    _
  // Predicated region
  $region38: #{s2s_forward.1} parent=0 // pred_check
    _
  $region39: #{s2s_forward.1} parent=0 // pred_check_branch
    %34 = sbr.rel (0) target = $region41
  $region40: #{s2s_forward.1} parent=0 // pred_region
    _
  $region41: #{s2s_forward.1} parent=0 // pred_fallthru
    _
  %v35 = vld [vmem:[%s0] sm:$0xff]
  %v36 = vld [vmem:[%s0 + $0x8] sm:$0xff]
  %v37 = vld [vmem:[%s0 + $0x10] sm:$0xff]
  %v38 = vld [vmem:[%s0 + $0x18] sm:$0xff]
  %v39 = vld [vmem:[%s0 + $0x20] sm:$0xff]
  %v40 = vld [vmem:[%s0 + $0x28] sm:$0xff]
  %v41 = vld [vmem:[%s0 + $0x30] sm:$0xff]
  %v42 = vld [vmem:[%s0 + $0x38] sm:$0xff]
  %v43 = vld [vmem:[%s2] sm:$0xff]
  %v44 = vld [vmem:[%s2 + $0x8] sm:$0xff]
  %v45 = vld [vmem:[%s4] sm:$0x1]
  %v47 = vlaneseq
  %v48 = vshrl.u32 %v47, 7
  %v49 = vsub.s32 0, %v48
  %v50 = vrot.slane %v45, %v49
  %vm52 = vcmask 130048
  %v54 = vsel %vm52, %v35, 0
  %v57 = vsel %vm52, %v36, 0
  %v60 = vsel %vm52, %v37, 0
  %v63 = vsel %vm52, %v38, 0
  %v66 = vsel %vm52, %v39, 0
  %v69 = vsel %vm52, %v40, 0
  %v72 = vsel %vm52, %v41, 0
  %v75 = vsel %vm52, %v42, 0
  %77 = vmatprep.subr.mxu0 0.0
  %78 = vmatpush1.msra.mxu0 %v43
  %79 = vmatprep.subr.mxu0 0.0
  %80 = vmatpush1.msra.mxu0 %v44
  %81 = vmatprep.subr.mxu0 0.0
  %82 = vmatpush1.msra.mxu0 0.0
  %83 = vmatprep.subr.mxu0 0.0
  %84 = vmatpush1.msra.mxu0 0.0
  %85 = vmatprep.subr.mxu0 0.0
  %86 = vmatpush1.msra.mxu0 0.0
  %87 = vmatprep.subr.mxu0 0.0
  %88 = vmatpush1.msra.mxu0 0.0
  %89 = vmatprep.subr.mxu0 0.0
  %90 = vmatpush1.msra.mxu0 0.0
  %91 = vmatprep.subr.mxu0 0.0
  %92 = vmatpush1.msra.mxu0 0.0
  %93 = vmatprep.subr.mxu0 0.0
  %94 = vmatpush1.msra.mxu0 0.0
  %95 = vmatprep.subr.mxu0 0.0
  %96 = vmatpush1.msra.mxu0 0.0
  %97 = vmatprep.subr.mxu0 0.0
  %98 = vmatpush1.msra.mxu0 0.0
  %99 = vmatprep.subr.mxu0 0.0
  %100 = vmatpush1.msra.mxu0 0.0
  %101 = vmatprep.subr.mxu0 0.0
  %102 = vmatpush1.msra.mxu0 0.0
  %103 = vmatprep.subr.mxu0 0.0
  %104 = vmatpush1.msra.mxu0 0.0
  %105 = vmatprep.subr.mxu0 0.0
  %106 = vmatpush1.msra.mxu0 0.0
  %107 = vmatprep.subr.mxu0 0.0
  %108 = vmatpush1.msra.mxu0 0.0
  %109 = vmatprep.subr.mxu0 0.0
  %110 = vmatpush1.msra.mxu0 0.0
  %111 = vmatprep.subr.mxu0 0.0
  %112 = vmatpush1.msra.mxu0 0.0
  %113 = vmatprep.subr.mxu0 0.0
  %114 = vmatpush1.msra.mxu0 0.0
  %115 = vmatprep.subr.mxu0 0.0
  %116 = vmatpush1.msra.mxu0 0.0
  %117 = vmatprep.subr.mxu0 0.0
  %118 = vmatpush1.msra.mxu0 0.0
  %119 = vmatprep.subr.mxu0 0.0
  %120 = vmatpush1.msra.mxu0 0.0
  %121 = vmatprep.subr.mxu0 0.0
  %122 = vmatpush1.msra.mxu0 0.0
  %123 = vmatprep.subr.mxu0 0.0
  %124 = vmatpush1.msra.mxu0 0.0
  %125 = vmatprep.subr.mxu0 0.0
  %126 = vmatpush1.msra.mxu0 0.0
  %127 = vmatprep.subr.mxu0 0.0
  %128 = vmatpush1.msra.mxu0 0.0
  %129 = vmatprep.subr.mxu0 0.0
  %130 = vmatpush1.msra.mxu0 0.0
  %131 = vmatprep.subr.mxu0 0.0
  %132 = vmatpush1.msra.mxu0 0.0
  %133 = vmatprep.subr.mxu0 0.0
  %134 = vmatpush1.msra.mxu0 0.0
  %135 = vmatprep.subr.mxu0 0.0
  %136 = vmatpush1.msra.mxu0 0.0
  %137 = vmatprep.subr.mxu0 0.0
  %138 = vmatpush1.msra.mxu0 0.0
  %139 = vmatprep.subr.mxu0 0.0
  %140 = vmatpush1.msra.mxu0 0.0
  %141 = vmatprep.mubr.f32.mxu0 0.0
  %142 = vmatmul.mubr.f32.gmra.mrb[0].mxu0 %v54
  %v143 = vpop.f32.mrb[0].mxu0
  %v144 = vadd.f32 %v50, %v143
  %v145 = vpop.f32.mrb[0].mxu0
  %146 = vmatprep.mubr.f32.mxu0 0.0
  %147 = vmatmul.mubr.f32.gmra.mrb[0].mxu0 %v57
  %v148 = vpop.f32.mrb[0].mxu0
  %v149 = vadd.f32 %v50, %v148
  %v150 = vpop.f32.mrb[0].mxu0
  %151 = vmatprep.mubr.f32.mxu0 0.0
  %152 = vmatmul.mubr.f32.gmra.mrb[0].mxu0 %v60
  %v153 = vpop.f32.mrb[0].mxu0
  %v154 = vadd.f32 %v50, %v153
  %v155 = vpop.f32.mrb[0].mxu0
  %156 = vmatprep.mubr.f32.mxu0 0.0
  %157 = vmatmul.mubr.f32.gmra.mrb[0].mxu0 %v63
  %v158 = vpop.f32.mrb[0].mxu0
  %v159 = vadd.f32 %v50, %v158
  %v160 = vpop.f32.mrb[0].mxu0
  %161 = vmatprep.mubr.f32.mxu0 0.0
  %162 = vmatmul.mubr.f32.gmra.mrb[0].mxu0 %v66
  %v163 = vpop.f32.mrb[0].mxu0
  %v164 = vadd.f32 %v50, %v163
  %v165 = vpop.f32.mrb[0].mxu0
  %166 = vmatprep.mubr.f32.mxu0 0.0
  %167 = vmatmul.mubr.f32.gmra.mrb[0].mxu0 %v69
  %v168 = vpop.f32.mrb[0].mxu0
  %v169 = vadd.f32 %v50, %v168
  %v170 = vpop.f32.mrb[0].mxu0
  %171 = vmatprep.mubr.f32.mxu0 0.0
  %172 = vmatmul.mubr.f32.gmra.mrb[0].mxu0 %v72
  %v173 = vpop.f32.mrb[0].mxu0
  %v174 = vadd.f32 %v50, %v173
  %v175 = vpop.f32.mrb[0].mxu0
  %176 = vmatprep.mubr.f32.mxu0 0.0
  %177 = vmatmul.mubr.f32.gmra.mrb[0].mxu0 %v75
  %v178 = vpop.f32.mrb[0].mxu0
  %v179 = vadd.f32 %v50, %v178
  %v180 = vpop.f32.mrb[0].mxu0
  %181 = vdwg.mxu0
  %182 = vst [vmem:[#allocation2] sm:$0xff] %v144
  %183 = vst [vmem:[#allocation2 + $0x8] sm:$0xff] %v149
  %184 = vst [vmem:[#allocation2 + $0x10] sm:$0xff] %v154
  %185 = vst [vmem:[#allocation2 + $0x18] sm:$0xff] %v159
  %186 = vst [vmem:[#allocation2 + $0x20] sm:$0xff] %v164
  %187 = vst [vmem:[#allocation2 + $0x28] sm:$0xff] %v169
  %188 = vst [vmem:[#allocation2 + $0x30] sm:$0xff] %v174
  %189 = vst [vmem:[#allocation2 + $0x38] sm:$0xff] %v179
  %v190 = vld [vmem:[%s1] sm:$0xff]
  %v191 = vld [vmem:[%s1 + $0x8] sm:$0xff]
  %v192 = vld [vmem:[%s1 + $0x10] sm:$0xff]
  %v193 = vld [vmem:[%s1 + $0x18] sm:$0xff]
  %v194 = vld [vmem:[%s1 + $0x20] sm:$0xff]
  %v195 = vld [vmem:[%s1 + $0x28] sm:$0xff]
  %v196 = vld [vmem:[%s1 + $0x30] sm:$0xff]
  %v197 = vld [vmem:[%s1 + $0x38] sm:$0xff]
  %v198 = vld [vmem:[%s5] sm:$0xff]
  %v199 = vld [vmem:[%s5 + $0x8] sm:$0xff]
  %v200 = vld [vmem:[%s7] sm:$0x1]
  %v202 = vlaneseq
  %v203 = vshrl.u32 %v202, 7
  %v204 = vsub.s32 0, %v203
  %v205 = vrot.slane %v200, %v204
  %v208 = vsel %vm52, %v190, 0
  %v211 = vsel %vm52, %v191, 0
  %v214 = vsel %vm52, %v192, 0
  %v217 = vsel %vm52, %v193, 0
  %v220 = vsel %vm52, %v194, 0
  %v223 = vsel %vm52, %v195, 0
  %v226 = vsel %vm52, %v196, 0
  %v229 = vsel %vm52, %v197, 0
  %231 = vmatprep.subr.mxu0 0.0
  %232 = vmatpush1.msra.mxu0 %v198
  %233 = vmatprep.subr.mxu0 0.0
  %234 = vmatpush1.msra.mxu0 %v199
  %235 = vmatprep.subr.mxu0 0.0
  %236 = vmatpush1.msra.mxu0 0.0
  %237 = vmatprep.subr.mxu0 0.0
  %238 = vmatpush1.msra.mxu0 0.0
  %239 = vmatprep.subr.mxu0 0.0
  %240 = vmatpush1.msra.mxu0 0.0
  %241 = vmatprep.subr.mxu0 0.0
  %242 = vmatpush1.msra.mxu0 0.0
  %243 = vmatprep.subr.mxu0 0.0
  %244 = vmatpush1.msra.mxu0 0.0
  %245 = vmatprep.subr.mxu0 0.0
  %246 = vmatpush1.msra.mxu0 0.0
  %247 = vmatprep.subr.mxu0 0.0
  %248 = vmatpush1.msra.mxu0 0.0
  %249 = vmatprep.subr.mxu0 0.0
  %250 = vmatpush1.msra.mxu0 0.0
  %251 = vmatprep.subr.mxu0 0.0
  %252 = vmatpush1.msra.mxu0 0.0
  %253 = vmatprep.subr.mxu0 0.0
  %254 = vmatpush1.msra.mxu0 0.0
  %255 = vmatprep.subr.mxu0 0.0
  %256 = vmatpush1.msra.mxu0 0.0
  %257 = vmatprep.subr.mxu0 0.0
  %258 = vmatpush1.msra.mxu0 0.0
  %259 = vmatprep.subr.mxu0 0.0
  %260 = vmatpush1.msra.mxu0 0.0
  %261 = vmatprep.subr.mxu0 0.0
  %262 = vmatpush1.msra.mxu0 0.0
  %263 = vmatprep.subr.mxu0 0.0
  %264 = vmatpush1.msra.mxu0 0.0
  %265 = vmatprep.subr.mxu0 0.0
  %266 = vmatpush1.msra.mxu0 0.0
  %267 = vmatprep.subr.mxu0 0.0
  %268 = vmatpush1.msra.mxu0 0.0
  %269 = vmatprep.subr.mxu0 0.0
  %270 = vmatpush1.msra.mxu0 0.0
  %271 = vmatprep.subr.mxu0 0.0
  %272 = vmatpush1.msra.mxu0 0.0
  %273 = vmatprep.subr.mxu0 0.0
  %274 = vmatpush1.msra.mxu0 0.0
  %275 = vmatprep.subr.mxu0 0.0
  %276 = vmatpush1.msra.mxu0 0.0
  %277 = vmatprep.subr.mxu0 0.0
  %278 = vmatpush1.msra.mxu0 0.0
  %279 = vmatprep.subr.mxu0 0.0
  %280 = vmatpush1.msra.mxu0 0.0
  %281 = vmatprep.subr.mxu0 0.0
  %282 = vmatpush1.msra.mxu0 0.0
  %283 = vmatprep.subr.mxu0 0.0
  %284 = vmatpush1.msra.mxu0 0.0
  %285 = vmatprep.subr.mxu0 0.0
  %286 = vmatpush1.msra.mxu0 0.0
  %287 = vmatprep.subr.mxu0 0.0
  %288 = vmatpush1.msra.mxu0 0.0
  %289 = vmatprep.subr.mxu0 0.0
  %290 = vmatpush1.msra.mxu0 0.0
  %291 = vmatprep.subr.mxu0 0.0
  %292 = vmatpush1.msra.mxu0 0.0
  %293 = vmatprep.subr.mxu0 0.0
  %294 = vmatpush1.msra.mxu0 0.0
  %295 = vmatprep.mubr.f32.mxu0 0.0
  %296 = vmatmul.mubr.f32.gmra.mrb[0].mxu0 %v208
  %v297 = vpop.f32.mrb[0].mxu0
  %v298 = vadd.f32 %v205, %v297
  %v299 = vpop.f32.mrb[0].mxu0
  %300 = vmatprep.mubr.f32.mxu0 0.0
  %301 = vmatmul.mubr.f32.gmra.mrb[0].mxu0 %v211
  %v302 = vpop.f32.mrb[0].mxu0
  %v303 = vadd.f32 %v205, %v302
  %v304 = vpop.f32.mrb[0].mxu0
  %305 = vmatprep.mubr.f32.mxu0 0.0
  %306 = vmatmul.mubr.f32.gmra.mrb[0].mxu0 %v214
  %v307 = vpop.f32.mrb[0].mxu0
  %v308 = vadd.f32 %v205, %v307
  %v309 = vpop.f32.mrb[0].mxu0
  %310 = vmatprep.mubr.f32.mxu0 0.0
  %311 = vmatmul.mubr.f32.gmra.mrb[0].mxu0 %v217
  %v312 = vpop.f32.mrb[0].mxu0
  %v313 = vadd.f32 %v205, %v312
  %v314 = vpop.f32.mrb[0].mxu0
  %315 = vmatprep.mubr.f32.mxu0 0.0
  %316 = vmatmul.mubr.f32.gmra.mrb[0].mxu0 %v220
  %v317 = vpop.f32.mrb[0].mxu0
  %v318 = vadd.f32 %v205, %v317
  %v319 = vpop.f32.mrb[0].mxu0
  %320 = vmatprep.mubr.f32.mxu0 0.0
  %321 = vmatmul.mubr.f32.gmra.mrb[0].mxu0 %v223
  %v322 = vpop.f32.mrb[0].mxu0
  %v323 = vadd.f32 %v205, %v322
  %v324 = vpop.f32.mrb[0].mxu0
  %325 = vmatprep.mubr.f32.mxu0 0.0
  %326 = vmatmul.mubr.f32.gmra.mrb[0].mxu0 %v226
  %v327 = vpop.f32.mrb[0].mxu0
  %v328 = vadd.f32 %v205, %v327
  %v329 = vpop.f32.mrb[0].mxu0
  %330 = vmatprep.mubr.f32.mxu0 0.0
  %331 = vmatmul.mubr.f32.gmra.mrb[0].mxu0 %v229
  %v332 = vpop.f32.mrb[0].mxu0
  %v333 = vadd.f32 %v205, %v332
  %v334 = vpop.f32.mrb[0].mxu0
  %335 = vdwg.mxu0
  %336 = vst [vmem:[#allocation3] sm:$0xff] %v298
  %337 = vst [vmem:[#allocation3 + $0x8] sm:$0xff] %v303
  %338 = vst [vmem:[#allocation3 + $0x10] sm:$0xff] %v308
  %339 = vst [vmem:[#allocation3 + $0x18] sm:$0xff] %v313
  %340 = vst [vmem:[#allocation3 + $0x20] sm:$0xff] %v318
  %341 = vst [vmem:[#allocation3 + $0x28] sm:$0xff] %v323
  %342 = vst [vmem:[#allocation3 + $0x30] sm:$0xff] %v328
  %343 = vst [vmem:[#allocation3 + $0x38] sm:$0xff] %v333
  %v344 = vld [vmem:[%s3] sm:$0xff]
  %v345 = vld [vmem:[%s3 + $0x8] sm:$0xff]
  %v346 = vld [vmem:[%s3 + $0x10] sm:$0xff]
  %v347 = vld [vmem:[%s3 + $0x18] sm:$0xff]
  %v348 = vld [vmem:[%s3 + $0x20] sm:$0xff]
  %v349 = vld [vmem:[%s3 + $0x28] sm:$0xff]
  %v350 = vld [vmem:[%s3 + $0x30] sm:$0xff]
  %v351 = vld [vmem:[%s3 + $0x38] sm:$0xff]
  %v352 = vld [vmem:[%s3 + $0x40] sm:$0xff]
  %v353 = vld [vmem:[%s3 + $0x48] sm:$0xff]
  %v354 = vld [vmem:[%s3 + $0x50] sm:$0xff]
  %v355 = vld [vmem:[%s3 + $0x58] sm:$0xff]
  %v356 = vld [vmem:[%s3 + $0x60] sm:$0xff]
  %v357 = vld [vmem:[%s3 + $0x68] sm:$0xff]
  %v358 = vld [vmem:[%s3 + $0x70] sm:$0xff]
  %v359 = vld [vmem:[%s3 + $0x78] sm:$0xff]
  %v360 = vld [vmem:[%s6] sm:$0xff]
  %v361 = vld [vmem:[%s6 + $0x8] sm:$0xff]
  %v362 = vld [vmem:[%s6 + $0x10] sm:$0xff]
  %v363 = vld [vmem:[%s6 + $0x18] sm:$0xff]
  %v364 = vld [vmem:[%s6 + $0x20] sm:$0xff]
  %v365 = vld [vmem:[%s6 + $0x28] sm:$0xff]
  %v366 = vld [vmem:[%s6 + $0x30] sm:$0xff]
  %v367 = vld [vmem:[%s6 + $0x38] sm:$0xff]
  %v368 = vld [vmem:[%s6 + $0x40] sm:$0xff]
  %v369 = vld [vmem:[%s6 + $0x48] sm:$0xff]
  %v370 = vld [vmem:[%s6 + $0x50] sm:$0xff]
  %v371 = vld [vmem:[%s6 + $0x58] sm:$0xff]
  %v372 = vld [vmem:[%s6 + $0x60] sm:$0xff]
  %v373 = vld [vmem:[%s6 + $0x68] sm:$0xff]
  %v374 = vld [vmem:[%s6 + $0x70] sm:$0xff]
  %v375 = vld [vmem:[%s6 + $0x78] sm:$0xff]
  %v376 = vld [vmem:[#allocation2] sm:$0xff]
  %377 = vmatprep.subr.mxu0 0.0
  %378 = vmatpush1.msra.mxu0 %v344
  %379 = vmatprep.subr.mxu0 0.0
  %380 = vmatpush1.msra.mxu0 %v345
  %381 = vmatprep.subr.mxu0 0.0
  %382 = vmatpush1.msra.mxu0 %v346
  %383 = vmatprep.subr.mxu0 0.0
  %384 = vmatpush1.msra.mxu0 %v347
  %385 = vmatprep.subr.mxu0 0.0
  %386 = vmatpush1.msra.mxu0 %v348
  %387 = vmatprep.subr.mxu0 0.0
  %388 = vmatpush1.msra.mxu0 %v349
  %389 = vmatprep.subr.mxu0 0.0
  %390 = vmatpush1.msra.mxu0 %v350
  %391 = vmatprep.subr.mxu0 0.0
  %392 = vmatpush1.msra.mxu0 %v351
  %393 = vmatprep.subr.mxu0 0.0
  %394 = vmatpush1.msra.mxu0 %v352
  %395 = vmatprep.subr.mxu0 0.0
  %396 = vmatpush1.msra.mxu0 %v353
  %397 = vmatprep.subr.mxu0 0.0
  %398 = vmatpush1.msra.mxu0 %v354
  %399 = vmatprep.subr.mxu0 0.0
  %400 = vmatpush1.msra.mxu0 %v355
  %401 = vmatprep.subr.mxu0 0.0
  %402 = vmatpush1.msra.mxu0 %v356
  %403 = vmatprep.subr.mxu0 0.0
  %404 = vmatpush1.msra.mxu0 %v357
  %405 = vmatprep.subr.mxu0 0.0
  %406 = vmatpush1.msra.mxu0 %v358
  %407 = vmatprep.subr.mxu0 0.0
  %408 = vmatpush1.msra.mxu0 %v359
  %409 = vmatprep.subr.mxu0 0.0
  %410 = vmatpush1.msra.mxu0 0.0
  %411 = vmatprep.subr.mxu0 0.0
  %412 = vmatpush1.msra.mxu0 0.0
  %413 = vmatprep.subr.mxu0 0.0
  %414 = vmatpush1.msra.mxu0 0.0
  %415 = vmatprep.subr.mxu0 0.0
  %416 = vmatpush1.msra.mxu0 0.0
  %417 = vmatprep.subr.mxu0 0.0
  %418 = vmatpush1.msra.mxu0 0.0
  %419 = vmatprep.subr.mxu0 0.0
  %420 = vmatpush1.msra.mxu0 0.0
  %421 = vmatprep.subr.mxu0 0.0
  %422 = vmatpush1.msra.mxu0 0.0
  %423 = vmatprep.subr.mxu0 0.0
  %424 = vmatpush1.msra.mxu0 0.0
  %425 = vmatprep.subr.mxu0 0.0
  %426 = vmatpush1.msra.mxu0 0.0
  %427 = vmatprep.subr.mxu0 0.0
  %428 = vmatpush1.msra.mxu0 0.0
  %429 = vmatprep.subr.mxu0 0.0
  %430 = vmatpush1.msra.mxu0 0.0
  %431 = vmatprep.subr.mxu0 0.0
  %432 = vmatpush1.msra.mxu0 0.0
  %433 = vmatprep.subr.mxu0 0.0
  %434 = vmatpush1.msra.mxu0 0.0
  %435 = vmatprep.subr.mxu0 0.0
  %436 = vmatpush1.msra.mxu0 0.0
  %437 = vmatprep.subr.mxu0 0.0
  %438 = vmatpush1.msra.mxu0 0.0
  %439 = vmatprep.subr.mxu0 0.0
  %440 = vmatpush1.msra.mxu0 0.0
  %441 = vmatprep.mubr.f32.mxu0 0.0
  %442 = vmatmul.mubr.f32.gmra.mrb[0].mxu0 0.0
  %v443 = vpop.f32.mrb[0].mxu0
  %v444 = vadd.f32 0.0, %v443
  %v445 = vpop.f32.mrb[0].mxu0
  %446 = vdwg.mxu0
  %v447 = vadd.f32 %v376, %v444
  %v448 = vtanh.pop %v447
  %s449 = scalar_lea.vmem [#allocation2], 8
  %v450 = vld [vmem:[%s449] sm:$0xff]
  %451 = vmatprep.subr.mxu0 0.0
  %452 = vmatpush1.msra.mxu0 %v344
  %453 = vmatprep.subr.mxu0 0.0
  %454 = vmatpush1.msra.mxu0 %v345
  %455 = vmatprep.subr.mxu0 0.0
  %456 = vmatpush1.msra.mxu0 %v346
  %457 = vmatprep.subr.mxu0 0.0
  %458 = vmatpush1.msra.mxu0 %v347
  %459 = vmatprep.subr.mxu0 0.0
  %460 = vmatpush1.msra.mxu0 %v348
  %461 = vmatprep.subr.mxu0 0.0
  %462 = vmatpush1.msra.mxu0 %v349
  %463 = vmatprep.subr.mxu0 0.0
  %464 = vmatpush1.msra.mxu0 %v350
  %465 = vmatprep.subr.mxu0 0.0
  %466 = vmatpush1.msra.mxu0 %v351
  %467 = vmatprep.subr.mxu0 0.0
  %468 = vmatpush1.msra.mxu0 %v352
  %469 = vmatprep.subr.mxu0 0.0
  %470 = vmatpush1.msra.mxu0 %v353
  %471 = vmatprep.subr.mxu0 0.0
  %472 = vmatpush1.msra.mxu0 %v354
  %473 = vmatprep.subr.mxu0 0.0
  %474 = vmatpush1.msra.mxu0 %v355
  %475 = vmatprep.subr.mxu0 0.0
  %476 = vmatpush1.msra.mxu0 %v356
  %477 = vmatprep.subr.mxu0 0.0
  %478 = vmatpush1.msra.mxu0 %v357
  %479 = vmatprep.subr.mxu0 0.0
  %480 = vmatpush1.msra.mxu0 %v358
  %481 = vmatprep.subr.mxu0 0.0
  %482 = vmatpush1.msra.mxu0 %v359
  %483 = vmatprep.subr.mxu0 0.0
  %484 = vmatpush1.msra.mxu0 0.0
  %485 = vmatprep.subr.mxu0 0.0
  %486 = vmatpush1.msra.mxu0 0.0
  %487 = vmatprep.subr.mxu0 0.0
  %488 = vmatpush1.msra.mxu0 0.0
  %489 = vmatprep.subr.mxu0 0.0
  %490 = vmatpush1.msra.mxu0 0.0
  %491 = vmatprep.subr.mxu0 0.0
  %492 = vmatpush1.msra.mxu0 0.0
  %493 = vmatprep.subr.mxu0 0.0
  %494 = vmatpush1.msra.mxu0 0.0
  %495 = vmatprep.subr.mxu0 0.0
  %496 = vmatpush1.msra.mxu0 0.0
  %497 = vmatprep.subr.mxu0 0.0
  %498 = vmatpush1.msra.mxu0 0.0
  %499 = vmatprep.subr.mxu0 0.0
  %500 = vmatpush1.msra.mxu0 0.0
  %501 = vmatprep.subr.mxu0 0.0
  %502 = vmatpush1.msra.mxu0 0.0
  %503 = vmatprep.subr.mxu0 0.0
  %504 = vmatpush1.msra.mxu0 0.0
  %505 = vmatprep.subr.mxu0 0.0
  %506 = vmatpush1.msra.mxu0 0.0
  %507 = vmatprep.subr.mxu0 0.0
  %508 = vmatpush1.msra.mxu0 0.0
  %509 = vmatprep.subr.mxu0 0.0
  %510 = vmatpush1.msra.mxu0 0.0
  %511 = vmatprep.subr.mxu0 0.0
  %512 = vmatpush1.msra.mxu0 0.0
  %513 = vmatprep.subr.mxu0 0.0
  %514 = vmatpush1.msra.mxu0 0.0
  %515 = vmatprep.mubr.f32.mxu0 0.0
  %516 = vmatmul.mubr.f32.gmra.mrb[0].mxu0 %v448
  %v517 = vpop.f32.mrb[0].mxu0
  %v518 = vadd.f32 0.0, %v517
  %v519 = vpop.f32.mrb[0].mxu0
  %520 = vdwg.mxu0
  %v521 = vadd.f32 %v450, %v518
  %v522 = vtanh.pop %v521
  %s523 = scalar_lea.vmem [#allocation2], 16
  %v524 = vld [vmem:[%s523] sm:$0xff]
  %525 = vmatprep.subr.mxu0 0.0
  %526 = vmatpush1.msra.mxu0 %v344
  %527 = vmatprep.subr.mxu0 0.0
  %528 = vmatpush1.msra.mxu0 %v345
  %529 = vmatprep.subr.mxu0 0.0
  %530 = vmatpush1.msra.mxu0 %v346
  %531 = vmatprep.subr.mxu0 0.0
  %532 = vmatpush1.msra.mxu0 %v347
  %533 = vmatprep.subr.mxu0 0.0
  %534 = vmatpush1.msra.mxu0 %v348
  %535 = vmatprep.subr.mxu0 0.0
  %536 = vmatpush1.msra.mxu0 %v349
  %537 = vmatprep.subr.mxu0 0.0
  %538 = vmatpush1.msra.mxu0 %v350
  %539 = vmatprep.subr.mxu0 0.0
  %540 = vmatpush1.msra.mxu0 %v351
  %541 = vmatprep.subr.mxu0 0.0
  %542 = vmatpush1.msra.mxu0 %v352
  %543 = vmatprep.subr.mxu0 0.0
  %544 = vmatpush1.msra.mxu0 %v353
  %545 = vmatprep.subr.mxu0 0.0
  %546 = vmatpush1.msra.mxu0 %v354
  %547 = vmatprep.subr.mxu0 0.0
  %548 = vmatpush1.msra.mxu0 %v355
  %549 = vmatprep.subr.mxu0 0.0
  %550 = vmatpush1.msra.mxu0 %v356
  %551 = vmatprep.subr.mxu0 0.0
  %552 = vmatpush1.msra.mxu0 %v357
  %553 = vmatprep.subr.mxu0 0.0
  %554 = vmatpush1.msra.mxu0 %v358
  %555 = vmatprep.subr.mxu0 0.0
  %556 = vmatpush1.msra.mxu0 %v359
  %557 = vmatprep.subr.mxu0 0.0
  %558 = vmatpush1.msra.mxu0 0.0
  %559 = vmatprep.subr.mxu0 0.0
  %560 = vmatpush1.msra.mxu0 0.0
  %561 = vmatprep.subr.mxu0 0.0
  %562 = vmatpush1.msra.mxu0 0.0
  %563 = vmatprep.subr.mxu0 0.0
  %564 = vmatpush1.msra.mxu0 0.0
  %565 = vmatprep.subr.mxu0 0.0
  %566 = vmatpush1.msra.mxu0 0.0
  %567 = vmatprep.subr.mxu0 0.0
  %568 = vmatpush1.msra.mxu0 0.0
  %569 = vmatprep.subr.mxu0 0.0
  %570 = vmatpush1.msra.mxu0 0.0
  %571 = vmatprep.subr.mxu0 0.0
  %572 = vmatpush1.msra.mxu0 0.0
  %573 = vmatprep.subr.mxu0 0.0
  %574 = vmatpush1.msra.mxu0 0.0
  %575 = vmatprep.subr.mxu0 0.0
  %576 = vmatpush1.msra.mxu0 0.0
  %577 = vmatprep.subr.mxu0 0.0
  %578 = vmatpush1.msra.mxu0 0.0
  %579 = vmatprep.subr.mxu0 0.0
  %580 = vmatpush1.msra.mxu0 0.0
  %581 = vmatprep.subr.mxu0 0.0
  %582 = vmatpush1.msra.mxu0 0.0
  %583 = vmatprep.subr.mxu0 0.0
  %584 = vmatpush1.msra.mxu0 0.0
  %585 = vmatprep.subr.mxu0 0.0
  %586 = vmatpush1.msra.mxu0 0.0
  %587 = vmatprep.subr.mxu0 0.0
  %588 = vmatpush1.msra.mxu0 0.0
  %589 = vmatprep.mubr.f32.mxu0 0.0
  %590 = vmatmul.mubr.f32.gmra.mrb[0].mxu0 %v522
  %v591 = vpop.f32.mrb[0].mxu0
  %v592 = vadd.f32 0.0, %v591
  %v593 = vpop.f32.mrb[0].mxu0
  %594 = vdwg.mxu0
  %v595 = vadd.f32 %v524, %v592
  %v596 = vtanh.pop %v595
  %s597 = scalar_lea.vmem [#allocation2], 24
  %v598 = vld [vmem:[%s597] sm:$0xff]
  %599 = vmatprep.subr.mxu0 0.0
  %600 = vmatpush1.msra.mxu0 %v344
  %601 = vmatprep.subr.mxu0 0.0
  %602 = vmatpush1.msra.mxu0 %v345
  %603 = vmatprep.subr.mxu0 0.0
  %604 = vmatpush1.msra.mxu0 %v346
  %605 = vmatprep.subr.mxu0 0.0
  %606 = vmatpush1.msra.mxu0 %v347
  %607 = vmatprep.subr.mxu0 0.0
  %608 = vmatpush1.msra.mxu0 %v348
  %609 = vmatprep.subr.mxu0 0.0
  %610 = vmatpush1.msra.mxu0 %v349
  %611 = vmatprep.subr.mxu0 0.0
  %612 = vmatpush1.msra.mxu0 %v350
  %613 = vmatprep.subr.mxu0 0.0
  %614 = vmatpush1.msra.mxu0 %v351
  %615 = vmatprep.subr.mxu0 0.0
  %616 = vmatpush1.msra.mxu0 %v352
  %617 = vmatprep.subr.mxu0 0.0
  %618 = vmatpush1.msra.mxu0 %v353
  %619 = vmatprep.subr.mxu0 0.0
  %620 = vmatpush1.msra.mxu0 %v354
  %621 = vmatprep.subr.mxu0 0.0
  %622 = vmatpush1.msra.mxu0 %v355
  %623 = vmatprep.subr.mxu0 0.0
  %624 = vmatpush1.msra.mxu0 %v356
  %625 = vmatprep.subr.mxu0 0.0
  %626 = vmatpush1.msra.mxu0 %v357
  %627 = vmatprep.subr.mxu0 0.0
  %628 = vmatpush1.msra.mxu0 %v358
  %629 = vmatprep.subr.mxu0 0.0
  %630 = vmatpush1.msra.mxu0 %v359
  %631 = vmatprep.subr.mxu0 0.0
  %632 = vmatpush1.msra.mxu0 0.0
  %633 = vmatprep.subr.mxu0 0.0
  %634 = vmatpush1.msra.mxu0 0.0
  %635 = vmatprep.subr.mxu0 0.0
  %636 = vmatpush1.msra.mxu0 0.0
  %637 = vmatprep.subr.mxu0 0.0
  %638 = vmatpush1.msra.mxu0 0.0
  %639 = vmatprep.subr.mxu0 0.0
  %640 = vmatpush1.msra.mxu0 0.0
  %641 = vmatprep.subr.mxu0 0.0
  %642 = vmatpush1.msra.mxu0 0.0
  %643 = vmatprep.subr.mxu0 0.0
  %644 = vmatpush1.msra.mxu0 0.0
  %645 = vmatprep.subr.mxu0 0.0
  %646 = vmatpush1.msra.mxu0 0.0
  %647 = vmatprep.subr.mxu0 0.0
  %648 = vmatpush1.msra.mxu0 0.0
  %649 = vmatprep.subr.mxu0 0.0
  %650 = vmatpush1.msra.mxu0 0.0
  %651 = vmatprep.subr.mxu0 0.0
  %652 = vmatpush1.msra.mxu0 0.0
  %653 = vmatprep.subr.mxu0 0.0
  %654 = vmatpush1.msra.mxu0 0.0
  %655 = vmatprep.subr.mxu0 0.0
  %656 = vmatpush1.msra.mxu0 0.0
  %657 = vmatprep.subr.mxu0 0.0
  %658 = vmatpush1.msra.mxu0 0.0
  %659 = vmatprep.subr.mxu0 0.0
  %660 = vmatpush1.msra.mxu0 0.0
  %661 = vmatprep.subr.mxu0 0.0
  %662 = vmatpush1.msra.mxu0 0.0
  %663 = vmatprep.mubr.f32.mxu0 0.0
  %664 = vmatmul.mubr.f32.gmra.mrb[0].mxu0 %v596
  %v665 = vpop.f32.mrb[0].mxu0
  %v666 = vadd.f32 0.0, %v665
  %v667 = vpop.f32.mrb[0].mxu0
  %668 = vdwg.mxu0
  %v669 = vadd.f32 %v598, %v666
  %v670 = vtanh.pop %v669
  %s671 = scalar_lea.vmem [#allocation2], 32
  %v672 = vld [vmem:[%s671] sm:$0xff]
  %673 = vmatprep.subr.mxu0 0.0
  %674 = vmatpush1.msra.mxu0 %v344
  %675 = vmatprep.subr.mxu0 0.0
  %676 = vmatpush1.msra.mxu0 %v345
  %677 = vmatprep.subr.mxu0 0.0
  %678 = vmatpush1.msra.mxu0 %v346
  %679 = vmatprep.subr.mxu0 0.0
  %680 = vmatpush1.msra.mxu0 %v347
  %681 = vmatprep.subr.mxu0 0.0
  %682 = vmatpush1.msra.mxu0 %v348
  %683 = vmatprep.subr.mxu0 0.0
  %684 = vmatpush1.msra.mxu0 %v349
  %685 = vmatprep.subr.mxu0 0.0
  %686 = vmatpush1.msra.mxu0 %v350
  %687 = vmatprep.subr.mxu0 0.0
  %688 = vmatpush1.msra.mxu0 %v351
  %689 = vmatprep.subr.mxu0 0.0
  %690 = vmatpush1.msra.mxu0 %v352
  %691 = vmatprep.subr.mxu0 0.0
  %692 = vmatpush1.msra.mxu0 %v353
  %693 = vmatprep.subr.mxu0 0.0
  %694 = vmatpush1.msra.mxu0 %v354
  %695 = vmatprep.subr.mxu0 0.0
  %696 = vmatpush1.msra.mxu0 %v355
  %697 = vmatprep.subr.mxu0 0.0
  %698 = vmatpush1.msra.mxu0 %v356
  %699 = vmatprep.subr.mxu0 0.0
  %700 = vmatpush1.msra.mxu0 %v357
  %701 = vmatprep.subr.mxu0 0.0
  %702 = vmatpush1.msra.mxu0 %v358
  %703 = vmatprep.subr.mxu0 0.0
  %704 = vmatpush1.msra.mxu0 %v359
  %705 = vmatprep.subr.mxu0 0.0
  %706 = vmatpush1.msra.mxu0 0.0
  %707 = vmatprep.subr.mxu0 0.0
  %708 = vmatpush1.msra.mxu0 0.0
  %709 = vmatprep.subr.mxu0 0.0
  %710 = vmatpush1.msra.mxu0 0.0
  %711 = vmatprep.subr.mxu0 0.0
  %712 = vmatpush1.msra.mxu0 0.0
  %713 = vmatprep.subr.mxu0 0.0
  %714 = vmatpush1.msra.mxu0 0.0
  %715 = vmatprep.subr.mxu0 0.0
  %716 = vmatpush1.msra.mxu0 0.0
  %717 = vmatprep.subr.mxu0 0.0
  %718 = vmatpush1.msra.mxu0 0.0
  %719 = vmatprep.subr.mxu0 0.0
  %720 = vmatpush1.msra.mxu0 0.0
  %721 = vmatprep.subr.mxu0 0.0
  %722 = vmatpush1.msra.mxu0 0.0
  %723 = vmatprep.subr.mxu0 0.0
  %724 = vmatpush1.msra.mxu0 0.0
  %725 = vmatprep.subr.mxu0 0.0
  %726 = vmatpush1.msra.mxu0 0.0
  %727 = vmatprep.subr.mxu0 0.0
  %728 = vmatpush1.msra.mxu0 0.0
  %729 = vmatprep.subr.mxu0 0.0
  %730 = vmatpush1.msra.mxu0 0.0
  %731 = vmatprep.subr.mxu0 0.0
  %732 = vmatpush1.msra.mxu0 0.0
  %733 = vmatprep.subr.mxu0 0.0
  %734 = vmatpush1.msra.mxu0 0.0
  %735 = vmatprep.subr.mxu0 0.0
  %736 = vmatpush1.msra.mxu0 0.0
  %737 = vmatprep.mubr.f32.mxu0 0.0
  %738 = vmatmul.mubr.f32.gmra.mrb[0].mxu0 %v670
  %v739 = vpop.f32.mrb[0].mxu0
  %v740 = vadd.f32 0.0, %v739
  %v741 = vpop.f32.mrb[0].mxu0
  %742 = vdwg.mxu0
  %v743 = vadd.f32 %v672, %v740
  %v744 = vtanh.pop %v743
  %s745 = scalar_lea.vmem [#allocation2], 40
  %v746 = vld [vmem:[%s745] sm:$0xff]
  %747 = vmatprep.subr.mxu0 0.0
  %748 = vmatpush1.msra.mxu0 %v344
  %749 = vmatprep.subr.mxu0 0.0
  %750 = vmatpush1.msra.mxu0 %v345
  %751 = vmatprep.subr.mxu0 0.0
  %752 = vmatpush1.msra.mxu0 %v346
  %753 = vmatprep.subr.mxu0 0.0
  %754 = vmatpush1.msra.mxu0 %v347
  %755 = vmatprep.subr.mxu0 0.0
  %756 = vmatpush1.msra.mxu0 %v348
  %757 = vmatprep.subr.mxu0 0.0
  %758 = vmatpush1.msra.mxu0 %v349
  %759 = vmatprep.subr.mxu0 0.0
  %760 = vmatpush1.msra.mxu0 %v350
  %761 = vmatprep.subr.mxu0 0.0
  %762 = vmatpush1.msra.mxu0 %v351
  %763 = vmatprep.subr.mxu0 0.0
  %764 = vmatpush1.msra.mxu0 %v352
  %765 = vmatprep.subr.mxu0 0.0
  %766 = vmatpush1.msra.mxu0 %v353
  %767 = vmatprep.subr.mxu0 0.0
  %768 = vmatpush1.msra.mxu0 %v354
  %769 = vmatprep.subr.mxu0 0.0
  %770 = vmatpush1.msra.mxu0 %v355
  %771 = vmatprep.subr.mxu0 0.0
  %772 = vmatpush1.msra.mxu0 %v356
  %773 = vmatprep.subr.mxu0 0.0
  %774 = vmatpush1.msra.mxu0 %v357
  %775 = vmatprep.subr.mxu0 0.0
  %776 = vmatpush1.msra.mxu0 %v358
  %777 = vmatprep.subr.mxu0 0.0
  %778 = vmatpush1.msra.mxu0 %v359
  %779 = vmatprep.subr.mxu0 0.0
  %780 = vmatpush1.msra.mxu0 0.0
  %781 = vmatprep.subr.mxu0 0.0
  %782 = vmatpush1.msra.mxu0 0.0
  %783 = vmatprep.subr.mxu0 0.0
  %784 = vmatpush1.msra.mxu0 0.0
  %785 = vmatprep.subr.mxu0 0.0
  %786 = vmatpush1.msra.mxu0 0.0
  %787 = vmatprep.subr.mxu0 0.0
  %788 = vmatpush1.msra.mxu0 0.0
  %789 = vmatprep.subr.mxu0 0.0
  %790 = vmatpush1.msra.mxu0 0.0
  %791 = vmatprep.subr.mxu0 0.0
  %792 = vmatpush1.msra.mxu0 0.0
  %793 = vmatprep.subr.mxu0 0.0
  %794 = vmatpush1.msra.mxu0 0.0
  %795 = vmatprep.subr.mxu0 0.0
  %796 = vmatpush1.msra.mxu0 0.0
  %797 = vmatprep.subr.mxu0 0.0
  %798 = vmatpush1.msra.mxu0 0.0
  %799 = vmatprep.subr.mxu0 0.0
  %800 = vmatpush1.msra.mxu0 0.0
  %801 = vmatprep.subr.mxu0 0.0
  %802 = vmatpush1.msra.mxu0 0.0
  %803 = vmatprep.subr.mxu0 0.0
  %804 = vmatpush1.msra.mxu0 0.0
  %805 = vmatprep.subr.mxu0 0.0
  %806 = vmatpush1.msra.mxu0 0.0
  %807 = vmatprep.subr.mxu0 0.0
  %808 = vmatpush1.msra.mxu0 0.0
  %809 = vmatprep.subr.mxu0 0.0
  %810 = vmatpush1.msra.mxu0 0.0
  %811 = vmatprep.mubr.f32.mxu0 0.0
  %812 = vmatmul.mubr.f32.gmra.mrb[0].mxu0 %v744
  %v813 = vpop.f32.mrb[0].mxu0
  %v814 = vadd.f32 0.0, %v813
  %v815 = vpop.f32.mrb[0].mxu0
  %816 = vdwg.mxu0
  %v817 = vadd.f32 %v746, %v814
  %v818 = vtanh.pop %v817
  %s819 = scalar_lea.vmem [#allocation2], 48
  %v820 = vld [vmem:[%s819] sm:$0xff]
  %821 = vmatprep.subr.mxu0 0.0
  %822 = vmatpush1.msra.mxu0 %v344
  %823 = vmatprep.subr.mxu0 0.0
  %824 = vmatpush1.msra.mxu0 %v345
  %825 = vmatprep.subr.mxu0 0.0
  %826 = vmatpush1.msra.mxu0 %v346
  %827 = vmatprep.subr.mxu0 0.0
  %828 = vmatpush1.msra.mxu0 %v347
  %829 = vmatprep.subr.mxu0 0.0
  %830 = vmatpush1.msra.mxu0 %v348
  %831 = vmatprep.subr.mxu0 0.0
  %832 = vmatpush1.msra.mxu0 %v349
  %833 = vmatprep.subr.mxu0 0.0
  %834 = vmatpush1.msra.mxu0 %v350
  %835 = vmatprep.subr.mxu0 0.0
  %836 = vmatpush1.msra.mxu0 %v351
  %837 = vmatprep.subr.mxu0 0.0
  %838 = vmatpush1.msra.mxu0 %v352
  %839 = vmatprep.subr.mxu0 0.0
  %840 = vmatpush1.msra.mxu0 %v353
  %841 = vmatprep.subr.mxu0 0.0
  %842 = vmatpush1.msra.mxu0 %v354
  %843 = vmatprep.subr.mxu0 0.0
  %844 = vmatpush1.msra.mxu0 %v355
  %845 = vmatprep.subr.mxu0 0.0
  %846 = vmatpush1.msra.mxu0 %v356
  %847 = vmatprep.subr.mxu0 0.0
  %848 = vmatpush1.msra.mxu0 %v357
  %849 = vmatprep.subr.mxu0 0.0
  %850 = vmatpush1.msra.mxu0 %v358
  %851 = vmatprep.subr.mxu0 0.0
  %852 = vmatpush1.msra.mxu0 %v359
  %853 = vmatprep.subr.mxu0 0.0
  %854 = vmatpush1.msra.mxu0 0.0
  %855 = vmatprep.subr.mxu0 0.0
  %856 = vmatpush1.msra.mxu0 0.0
  %857 = vmatprep.subr.mxu0 0.0
  %858 = vmatpush1.msra.mxu0 0.0
  %859 = vmatprep.subr.mxu0 0.0
  %860 = vmatpush1.msra.mxu0 0.0
  %861 = vmatprep.subr.mxu0 0.0
  %862 = vmatpush1.msra.mxu0 0.0
  %863 = vmatprep.subr.mxu0 0.0
  %864 = vmatpush1.msra.mxu0 0.0
  %865 = vmatprep.subr.mxu0 0.0
  %866 = vmatpush1.msra.mxu0 0.0
  %867 = vmatprep.subr.mxu0 0.0
  %868 = vmatpush1.msra.mxu0 0.0
  %869 = vmatprep.subr.mxu0 0.0
  %870 = vmatpush1.msra.mxu0 0.0
  %871 = vmatprep.subr.mxu0 0.0
  %872 = vmatpush1.msra.mxu0 0.0
  %873 = vmatprep.subr.mxu0 0.0
  %874 = vmatpush1.msra.mxu0 0.0
  %875 = vmatprep.subr.mxu0 0.0
  %876 = vmatpush1.msra.mxu0 0.0
  %877 = vmatprep.subr.mxu0 0.0
  %878 = vmatpush1.msra.mxu0 0.0
  %879 = vmatprep.subr.mxu0 0.0
  %880 = vmatpush1.msra.mxu0 0.0
  %881 = vmatprep.subr.mxu0 0.0
  %882 = vmatpush1.msra.mxu0 0.0
  %883 = vmatprep.subr.mxu0 0.0
  %884 = vmatpush1.msra.mxu0 0.0
  %885 = vmatprep.mubr.f32.mxu0 0.0
  %886 = vmatmul.mubr.f32.gmra.mrb[0].mxu0 %v818
  %v887 = vpop.f32.mrb[0].mxu0
  %v888 = vadd.f32 0.0, %v887
  %v889 = vpop.f32.mrb[0].mxu0
  %890 = vdwg.mxu0
  %v891 = vadd.f32 %v820, %v888
  %v892 = vtanh.pop %v891
  %s893 = scalar_lea.vmem [#allocation2], 56
  %v894 = vld [vmem:[%s893] sm:$0xff]
  %895 = vmatprep.subr.mxu0 0.0
  %896 = vmatpush1.msra.mxu0 %v344
  %897 = vmatprep.subr.mxu0 0.0
  %898 = vmatpush1.msra.mxu0 %v345
  %899 = vmatprep.subr.mxu0 0.0
  %900 = vmatpush1.msra.mxu0 %v346
  %901 = vmatprep.subr.mxu0 0.0
  %902 = vmatpush1.msra.mxu0 %v347
  %903 = vmatprep.subr.mxu0 0.0
  %904 = vmatpush1.msra.mxu0 %v348
  %905 = vmatprep.subr.mxu0 0.0
  %906 = vmatpush1.msra.mxu0 %v349
  %907 = vmatprep.subr.mxu0 0.0
  %908 = vmatpush1.msra.mxu0 %v350
  %909 = vmatprep.subr.mxu0 0.0
  %910 = vmatpush1.msra.mxu0 %v351
  %911 = vmatprep.subr.mxu0 0.0
  %912 = vmatpush1.msra.mxu0 %v352
  %913 = vmatprep.subr.mxu0 0.0
  %914 = vmatpush1.msra.mxu0 %v353
  %915 = vmatprep.subr.mxu0 0.0
  %916 = vmatpush1.msra.mxu0 %v354
  %917 = vmatprep.subr.mxu0 0.0
  %918 = vmatpush1.msra.mxu0 %v355
  %919 = vmatprep.subr.mxu0 0.0
  %920 = vmatpush1.msra.mxu0 %v356
  %921 = vmatprep.subr.mxu0 0.0
  %922 = vmatpush1.msra.mxu0 %v357
  %923 = vmatprep.subr.mxu0 0.0
  %924 = vmatpush1.msra.mxu0 %v358
  %925 = vmatprep.subr.mxu0 0.0
  %926 = vmatpush1.msra.mxu0 %v359
  %927 = vmatprep.subr.mxu0 0.0
  %928 = vmatpush1.msra.mxu0 0.0
  %929 = vmatprep.subr.mxu0 0.0
  %930 = vmatpush1.msra.mxu0 0.0
  %931 = vmatprep.subr.mxu0 0.0
  %932 = vmatpush1.msra.mxu0 0.0
  %933 = vmatprep.subr.mxu0 0.0
  %934 = vmatpush1.msra.mxu0 0.0
  %935 = vmatprep.subr.mxu0 0.0
  %936 = vmatpush1.msra.mxu0 0.0
  %937 = vmatprep.subr.mxu0 0.0
  %938 = vmatpush1.msra.mxu0 0.0
  %939 = vmatprep.subr.mxu0 0.0
  %940 = vmatpush1.msra.mxu0 0.0
  %941 = vmatprep.subr.mxu0 0.0
  %942 = vmatpush1.msra.mxu0 0.0
  %943 = vmatprep.subr.mxu0 0.0
  %944 = vmatpush1.msra.mxu0 0.0
  %945 = vmatprep.subr.mxu0 0.0
  %946 = vmatpush1.msra.mxu0 0.0
  %947 = vmatprep.subr.mxu0 0.0
  %948 = vmatpush1.msra.mxu0 0.0
  %949 = vmatprep.subr.mxu0 0.0
  %950 = vmatpush1.msra.mxu0 0.0
  %951 = vmatprep.subr.mxu0 0.0
  %952 = vmatpush1.msra.mxu0 0.0
  %953 = vmatprep.subr.mxu0 0.0
  %954 = vmatpush1.msra.mxu0 0.0
  %955 = vmatprep.subr.mxu0 0.0
  %956 = vmatpush1.msra.mxu0 0.0
  %957 = vmatprep.subr.mxu0 0.0
  %958 = vmatpush1.msra.mxu0 0.0
  %959 = vmatprep.mubr.f32.mxu0 0.0
  %960 = vmatmul.mubr.f32.gmra.mrb[0].mxu0 %v892
  %v961 = vpop.f32.mrb[0].mxu0
  %v962 = vadd.f32 0.0, %v961
  %v963 = vpop.f32.mrb[0].mxu0
  %964 = vdwg.mxu0
  %v965 = vadd.f32 %v894, %v962
  %v966 = vtanh.pop %v965
  %v967 = vld [vmem:[#allocation3] sm:$0xff]
  %968 = vmatprep.subr.mxu0 0.0
  %969 = vmatpush1.msra.mxu0 %v360
  %970 = vmatprep.subr.mxu0 0.0
  %971 = vmatpush1.msra.mxu0 %v361
  %972 = vmatprep.subr.mxu0 0.0
  %973 = vmatpush1.msra.mxu0 %v362
  %974 = vmatprep.subr.mxu0 0.0
  %975 = vmatpush1.msra.mxu0 %v363
  %976 = vmatprep.subr.mxu0 0.0
  %977 = vmatpush1.msra.mxu0 %v364
  %978 = vmatprep.subr.mxu0 0.0
  %979 = vmatpush1.msra.mxu0 %v365
  %980 = vmatprep.subr.mxu0 0.0
  %981 = vmatpush1.msra.mxu0 %v366
  %982 = vmatprep.subr.mxu0 0.0
  %983 = vmatpush1.msra.mxu0 %v367
  %984 = vmatprep.subr.mxu0 0.0
  %985 = vmatpush1.msra.mxu0 %v368
  %986 = vmatprep.subr.mxu0 0.0
  %987 = vmatpush1.msra.mxu0 %v369
  %988 = vmatprep.subr.mxu0 0.0
  %989 = vmatpush1.msra.mxu0 %v370
  %990 = vmatprep.subr.mxu0 0.0
  %991 = vmatpush1.msra.mxu0 %v371
  %992 = vmatprep.subr.mxu0 0.0
  %993 = vmatpush1.msra.mxu0 %v372
  %994 = vmatprep.subr.mxu0 0.0
  %995 = vmatpush1.msra.mxu0 %v373
  %996 = vmatprep.subr.mxu0 0.0
  %997 = vmatpush1.msra.mxu0 %v374
  %998 = vmatprep.subr.mxu0 0.0
  %999 = vmatpush1.msra.mxu0 %v375
  %1000 = vmatprep.subr.mxu0 0.0
  %1001 = vmatpush1.msra.mxu0 0.0
  %1002 = vmatprep.subr.mxu0 0.0
  %1003 = vmatpush1.msra.mxu0 0.0
  %1004 = vmatprep.subr.mxu0 0.0
  %1005 = vmatpush1.msra.mxu0 0.0
  %1006 = vmatprep.subr.mxu0 0.0
  %1007 = vmatpush1.msra.mxu0 0.0
  %1008 = vmatprep.subr.mxu0 0.0
  %1009 = vmatpush1.msra.mxu0 0.0
  %1010 = vmatprep.subr.mxu0 0.0
  %1011 = vmatpush1.msra.mxu0 0.0
  %1012 = vmatprep.subr.mxu0 0.0
  %1013 = vmatpush1.msra.mxu0 0.0
  %1014 = vmatprep.subr.mxu0 0.0
  %1015 = vmatpush1.msra.mxu0 0.0
  %1016 = vmatprep.subr.mxu0 0.0
  %1017 = vmatpush1.msra.mxu0 0.0
  %1018 = vmatprep.subr.mxu0 0.0
  %1019 = vmatpush1.msra.mxu0 0.0
  %1020 = vmatprep.subr.mxu0 0.0
  %1021 = vmatpush1.msra.mxu0 0.0
  %1022 = vmatprep.subr.mxu0 0.0
  %1023 = vmatpush1.msra.mxu0 0.0
  %1024 = vmatprep.subr.mxu0 0.0
  %1025 = vmatpush1.msra.mxu0 0.0
  %1026 = vmatprep.subr.mxu0 0.0
  %1027 = vmatpush1.msra.mxu0 0.0
  %1028 = vmatprep.subr.mxu0 0.0
  %1029 = vmatpush1.msra.mxu0 0.0
  %1030 = vmatprep.subr.mxu0 0.0
  %1031 = vmatpush1.msra.mxu0 0.0
  %1032 = vmatprep.mubr.f32.mxu0 0.0
  %1033 = vmatmul.mubr.f32.gmra.mrb[0].mxu0 %v966
  %v1034 = vpop.f32.mrb[0].mxu0
  %v1035 = vadd.f32 0.0, %v1034
  %v1036 = vpop.f32.mrb[0].mxu0
  %1037 = vdwg.mxu0
  %v1038 = vadd.f32 %v967, %v1035
  %v1039 = vtanh.pop %v1038
  %1040 = vst [vmem:[#allocation4] sm:$0xff] %v1039
  %s1041 = scalar_lea.vmem [#allocation3], 8
  %v1042 = vld [vmem:[%s1041] sm:$0xff]
  %1043 = vmatprep.subr.mxu0 0.0
  %1044 = vmatpush1.msra.mxu0 %v360
  %1045 = vmatprep.subr.mxu0 0.0
  %1046 = vmatpush1.msra.mxu0 %v361
  %1047 = vmatprep.subr.mxu0 0.0
  %1048 = vmatpush1.msra.mxu0 %v362
  %1049 = vmatprep.subr.mxu0 0.0
  %1050 = vmatpush1.msra.mxu0 %v363
  %1051 = vmatprep.subr.mxu0 0.0
  %1052 = vmatpush1.msra.mxu0 %v364
  %1053 = vmatprep.subr.mxu0 0.0
  %1054 = vmatpush1.msra.mxu0 %v365
  %1055 = vmatprep.subr.mxu0 0.0
  %1056 = vmatpush1.msra.mxu0 %v366
  %1057 = vmatprep.subr.mxu0 0.0
  %1058 = vmatpush1.msra.mxu0 %v367
  %1059 = vmatprep.subr.mxu0 0.0
  %1060 = vmatpush1.msra.mxu0 %v368
  %1061 = vmatprep.subr.mxu0 0.0
  %1062 = vmatpush1.msra.mxu0 %v369
  %1063 = vmatprep.subr.mxu0 0.0
  %1064 = vmatpush1.msra.mxu0 %v370
  %1065 = vmatprep.subr.mxu0 0.0
  %1066 = vmatpush1.msra.mxu0 %v371
  %1067 = vmatprep.subr.mxu0 0.0
  %1068 = vmatpush1.msra.mxu0 %v372
  %1069 = vmatprep.subr.mxu0 0.0
  %1070 = vmatpush1.msra.mxu0 %v373
  %1071 = vmatprep.subr.mxu0 0.0
  %1072 = vmatpush1.msra.mxu0 %v374
  %1073 = vmatprep.subr.mxu0 0.0
  %1074 = vmatpush1.msra.mxu0 %v375
  %1075 = vmatprep.subr.mxu0 0.0
  %1076 = vmatpush1.msra.mxu0 0.0
  %1077 = vmatprep.subr.mxu0 0.0
  %1078 = vmatpush1.msra.mxu0 0.0
  %1079 = vmatprep.subr.mxu0 0.0
  %1080 = vmatpush1.msra.mxu0 0.0
  %1081 = vmatprep.subr.mxu0 0.0
  %1082 = vmatpush1.msra.mxu0 0.0
  %1083 = vmatprep.subr.mxu0 0.0
  %1084 = vmatpush1.msra.mxu0 0.0
  %1085 = vmatprep.subr.mxu0 0.0
  %1086 = vmatpush1.msra.mxu0 0.0
  %1087 = vmatprep.subr.mxu0 0.0
  %1088 = vmatpush1.msra.mxu0 0.0
  %1089 = vmatprep.subr.mxu0 0.0
  %1090 = vmatpush1.msra.mxu0 0.0
  %1091 = vmatprep.subr.mxu0 0.0
  %1092 = vmatpush1.msra.mxu0 0.0
  %1093 = vmatprep.subr.mxu0 0.0
  %1094 = vmatpush1.msra.mxu0 0.0
  %1095 = vmatprep.subr.mxu0 0.0
  %1096 = vmatpush1.msra.mxu0 0.0
  %1097 = vmatprep.subr.mxu0 0.0
  %1098 = vmatpush1.msra.mxu0 0.0
  %1099 = vmatprep.subr.mxu0 0.0
  %1100 = vmatpush1.msra.mxu0 0.0
  %1101 = vmatprep.subr.mxu0 0.0
  %1102 = vmatpush1.msra.mxu0 0.0
  %1103 = vmatprep.subr.mxu0 0.0
  %1104 = vmatpush1.msra.mxu0 0.0
  %1105 = vmatprep.subr.mxu0 0.0
  %1106 = vmatpush1.msra.mxu0 0.0
  %1107 = vmatprep.mubr.f32.mxu0 0.0
  %1108 = vmatmul.mubr.f32.gmra.mrb[0].mxu0 %v1039
  %v1109 = vpop.f32.mrb[0].mxu0
  %v1110 = vadd.f32 0.0, %v1109
  %v1111 = vpop.f32.mrb[0].mxu0
  %1112 = vdwg.mxu0
  %v1113 = vadd.f32 %v1042, %v1110
  %v1114 = vtanh.pop %v1113
  %s1115 = scalar_lea.vmem [#allocation4], 8
  %1116 = vst [vmem:[%s1115] sm:$0xff] %v1114
  %s1117 = scalar_lea.vmem [#allocation3], 16
  %v1118 = vld [vmem:[%s1117] sm:$0xff]
  %1119 = vmatprep.subr.mxu0 0.0
  %1120 = vmatpush1.msra.mxu0 %v360
  %1121 = vmatprep.subr.mxu0 0.0
  %1122 = vmatpush1.msra.mxu0 %v361
  %1123 = vmatprep.subr.mxu0 0.0
  %1124 = vmatpush1.msra.mxu0 %v362
  %1125 = vmatprep.subr.mxu0 0.0
  %1126 = vmatpush1.msra.mxu0 %v363
  %1127 = vmatprep.subr.mxu0 0.0
  %1128 = vmatpush1.msra.mxu0 %v364
  %1129 = vmatprep.subr.mxu0 0.0
  %1130 = vmatpush1.msra.mxu0 %v365
  %1131 = vmatprep.subr.mxu0 0.0
  %1132 = vmatpush1.msra.mxu0 %v366
  %1133 = vmatprep.subr.mxu0 0.0
  %1134 = vmatpush1.msra.mxu0 %v367
  %1135 = vmatprep.subr.mxu0 0.0
  %1136 = vmatpush1.msra.mxu0 %v368
  %1137 = vmatprep.subr.mxu0 0.0
  %1138 = vmatpush1.msra.mxu0 %v369
  %1139 = vmatprep.subr.mxu0 0.0
  %1140 = vmatpush1.msra.mxu0 %v370
  %1141 = vmatprep.subr.mxu0 0.0
  %1142 = vmatpush1.msra.mxu0 %v371
  %1143 = vmatprep.subr.mxu0 0.0
  %1144 = vmatpush1.msra.mxu0 %v372
  %1145 = vmatprep.subr.mxu0 0.0
  %1146 = vmatpush1.msra.mxu0 %v373
  %1147 = vmatprep.subr.mxu0 0.0
  %1148 = vmatpush1.msra.mxu0 %v374
  %1149 = vmatprep.subr.mxu0 0.0
  %1150 = vmatpush1.msra.mxu0 %v375
  %1151 = vmatprep.subr.mxu0 0.0
  %1152 = vmatpush1.msra.mxu0 0.0
  %1153 = vmatprep.subr.mxu0 0.0
  %1154 = vmatpush1.msra.mxu0 0.0
  %1155 = vmatprep.subr.mxu0 0.0
  %1156 = vmatpush1.msra.mxu0 0.0
  %1157 = vmatprep.subr.mxu0 0.0
  %1158 = vmatpush1.msra.mxu0 0.0
  %1159 = vmatprep.subr.mxu0 0.0
  %1160 = vmatpush1.msra.mxu0 0.0
  %1161 = vmatprep.subr.mxu0 0.0
  %1162 = vmatpush1.msra.mxu0 0.0
  %1163 = vmatprep.subr.mxu0 0.0
  %1164 = vmatpush1.msra.mxu0 0.0
  %1165 = vmatprep.subr.mxu0 0.0
  %1166 = vmatpush1.msra.mxu0 0.0
  %1167 = vmatprep.subr.mxu0 0.0
  %1168 = vmatpush1.msra.mxu0 0.0
  %1169 = vmatprep.subr.mxu0 0.0
  %1170 = vmatpush1.msra.mxu0 0.0
  %1171 = vmatprep.subr.mxu0 0.0
  %1172 = vmatpush1.msra.mxu0 0.0
  %1173 = vmatprep.subr.mxu0 0.0
  %1174 = vmatpush1.msra.mxu0 0.0
  %1175 = vmatprep.subr.mxu0 0.0
  %1176 = vmatpush1.msra.mxu0 0.0
  %1177 = vmatprep.subr.mxu0 0.0
  %1178 = vmatpush1.msra.mxu0 0.0
  %1179 = vmatprep.subr.mxu0 0.0
  %1180 = vmatpush1.msra.mxu0 0.0
  %1181 = vmatprep.subr.mxu0 0.0
  %1182 = vmatpush1.msra.mxu0 0.0
  %1183 = vmatprep.mubr.f32.mxu0 0.0
  %1184 = vmatmul.mubr.f32.gmra.mrb[0].mxu0 %v1114
  %v1185 = vpop.f32.mrb[0].mxu0
  %v1186 = vadd.f32 0.0, %v1185
  %v1187 = vpop.f32.mrb[0].mxu0
  %1188 = vdwg.mxu0
  %v1189 = vadd.f32 %v1118, %v1186
  %v1190 = vtanh.pop %v1189
  %s1191 = scalar_lea.vmem [#allocation4], 16
  %1192 = vst [vmem:[%s1191] sm:$0xff] %v1190
  %s1193 = scalar_lea.vmem [#allocation3], 24
  %v1194 = vld [vmem:[%s1193] sm:$0xff]
  %1195 = vmatprep.subr.mxu0 0.0
  %1196 = vmatpush1.msra.mxu0 %v360
  %1197 = vmatprep.subr.mxu0 0.0
  %1198 = vmatpush1.msra.mxu0 %v361
  %1199 = vmatprep.subr.mxu0 0.0
  %1200 = vmatpush1.msra.mxu0 %v362
  %1201 = vmatprep.subr.mxu0 0.0
  %1202 = vmatpush1.msra.mxu0 %v363
  %1203 = vmatprep.subr.mxu0 0.0
  %1204 = vmatpush1.msra.mxu0 %v364
  %1205 = vmatprep.subr.mxu0 0.0
  %1206 = vmatpush1.msra.mxu0 %v365
  %1207 = vmatprep.subr.mxu0 0.0
  %1208 = vmatpush1.msra.mxu0 %v366
  %1209 = vmatprep.subr.mxu0 0.0
  %1210 = vmatpush1.msra.mxu0 %v367
  %1211 = vmatprep.subr.mxu0 0.0
  %1212 = vmatpush1.msra.mxu0 %v368
  %1213 = vmatprep.subr.mxu0 0.0
  %1214 = vmatpush1.msra.mxu0 %v369
  %1215 = vmatprep.subr.mxu0 0.0
  %1216 = vmatpush1.msra.mxu0 %v370
  %1217 = vmatprep.subr.mxu0 0.0
  %1218 = vmatpush1.msra.mxu0 %v371
  %1219 = vmatprep.subr.mxu0 0.0
  %1220 = vmatpush1.msra.mxu0 %v372
  %1221 = vmatprep.subr.mxu0 0.0
  %1222 = vmatpush1.msra.mxu0 %v373
  %1223 = vmatprep.subr.mxu0 0.0
  %1224 = vmatpush1.msra.mxu0 %v374
  %1225 = vmatprep.subr.mxu0 0.0
  %1226 = vmatpush1.msra.mxu0 %v375
  %1227 = vmatprep.subr.mxu0 0.0
  %1228 = vmatpush1.msra.mxu0 0.0
  %1229 = vmatprep.subr.mxu0 0.0
  %1230 = vmatpush1.msra.mxu0 0.0
  %1231 = vmatprep.subr.mxu0 0.0
  %1232 = vmatpush1.msra.mxu0 0.0
  %1233 = vmatprep.subr.mxu0 0.0
  %1234 = vmatpush1.msra.mxu0 0.0
  %1235 = vmatprep.subr.mxu0 0.0
  %1236 = vmatpush1.msra.mxu0 0.0
  %1237 = vmatprep.subr.mxu0 0.0
  %1238 = vmatpush1.msra.mxu0 0.0
  %1239 = vmatprep.subr.mxu0 0.0
  %1240 = vmatpush1.msra.mxu0 0.0
  %1241 = vmatprep.subr.mxu0 0.0
  %1242 = vmatpush1.msra.mxu0 0.0
  %1243 = vmatprep.subr.mxu0 0.0
  %1244 = vmatpush1.msra.mxu0 0.0
  %1245 = vmatprep.subr.mxu0 0.0
  %1246 = vmatpush1.msra.mxu0 0.0
  %1247 = vmatprep.subr.mxu0 0.0
  %1248 = vmatpush1.msra.mxu0 0.0
  %1249 = vmatprep.subr.mxu0 0.0
  %1250 = vmatpush1.msra.mxu0 0.0
  %1251 = vmatprep.subr.mxu0 0.0
  %1252 = vmatpush1.msra.mxu0 0.0
  %1253 = vmatprep.subr.mxu0 0.0
  %1254 = vmatpush1.msra.mxu0 0.0
  %1255 = vmatprep.subr.mxu0 0.0
  %1256 = vmatpush1.msra.mxu0 0.0
  %1257 = vmatprep.subr.mxu0 0.0
  %1258 = vmatpush1.msra.mxu0 0.0
  %1259 = vmatprep.mubr.f32.mxu0 0.0
  %1260 = vmatmul.mubr.f32.gmra.mrb[0].mxu0 %v1190
  %v1261 = vpop.f32.mrb[0].mxu0
  %v1262 = vadd.f32 0.0, %v1261
  %v1263 = vpop.f32.mrb[0].mxu0
  %1264 = vdwg.mxu0
  %v1265 = vadd.f32 %v1194, %v1262
  %v1266 = vtanh.pop %v1265
  %s1267 = scalar_lea.vmem [#allocation4], 24
  %1268 = vst [vmem:[%s1267] sm:$0xff] %v1266
  %s1269 = scalar_lea.vmem [#allocation3], 32
  %v1270 = vld [vmem:[%s1269] sm:$0xff]
  %1271 = vmatprep.subr.mxu0 0.0
  %1272 = vmatpush1.msra.mxu0 %v360
  %1273 = vmatprep.subr.mxu0 0.0
  %1274 = vmatpush1.msra.mxu0 %v361
  %1275 = vmatprep.subr.mxu0 0.0
  %1276 = vmatpush1.msra.mxu0 %v362
  %1277 = vmatprep.subr.mxu0 0.0
  %1278 = vmatpush1.msra.mxu0 %v363
  %1279 = vmatprep.subr.mxu0 0.0
  %1280 = vmatpush1.msra.mxu0 %v364
  %1281 = vmatprep.subr.mxu0 0.0
  %1282 = vmatpush1.msra.mxu0 %v365
  %1283 = vmatprep.subr.mxu0 0.0
  %1284 = vmatpush1.msra.mxu0 %v366
  %1285 = vmatprep.subr.mxu0 0.0
  %1286 = vmatpush1.msra.mxu0 %v367
  %1287 = vmatprep.subr.mxu0 0.0
  %1288 = vmatpush1.msra.mxu0 %v368
  %1289 = vmatprep.subr.mxu0 0.0
  %1290 = vmatpush1.msra.mxu0 %v369
  %1291 = vmatprep.subr.mxu0 0.0
  %1292 = vmatpush1.msra.mxu0 %v370
  %1293 = vmatprep.subr.mxu0 0.0
  %1294 = vmatpush1.msra.mxu0 %v371
  %1295 = vmatprep.subr.mxu0 0.0
  %1296 = vmatpush1.msra.mxu0 %v372
  %1297 = vmatprep.subr.mxu0 0.0
  %1298 = vmatpush1.msra.mxu0 %v373
  %1299 = vmatprep.subr.mxu0 0.0
  %1300 = vmatpush1.msra.mxu0 %v374
  %1301 = vmatprep.subr.mxu0 0.0
  %1302 = vmatpush1.msra.mxu0 %v375
  %1303 = vmatprep.subr.mxu0 0.0
  %1304 = vmatpush1.msra.mxu0 0.0
  %1305 = vmatprep.subr.mxu0 0.0
  %1306 = vmatpush1.msra.mxu0 0.0
  %1307 = vmatprep.subr.mxu0 0.0
  %1308 = vmatpush1.msra.mxu0 0.0
  %1309 = vmatprep.subr.mxu0 0.0
  %1310 = vmatpush1.msra.mxu0 0.0
  %1311 = vmatprep.subr.mxu0 0.0
  %1312 = vmatpush1.msra.mxu0 0.0
  %1313 = vmatprep.subr.mxu0 0.0
  %1314 = vmatpush1.msra.mxu0 0.0
  %1315 = vmatprep.subr.mxu0 0.0
  %1316 = vmatpush1.msra.mxu0 0.0
  %1317 = vmatprep.subr.mxu0 0.0
  %1318 = vmatpush1.msra.mxu0 0.0
  %1319 = vmatprep.subr.mxu0 0.0
  %1320 = vmatpush1.msra.mxu0 0.0
  %1321 = vmatprep.subr.mxu0 0.0
  %1322 = vmatpush1.msra.mxu0 0.0
  %1323 = vmatprep.subr.mxu0 0.0
  %1324 = vmatpush1.msra.mxu0 0.0
  %1325 = vmatprep.subr.mxu0 0.0
  %1326 = vmatpush1.msra.mxu0 0.0
  %1327 = vmatprep.subr.mxu0 0.0
  %1328 = vmatpush1.msra.mxu0 0.0
  %1329 = vmatprep.subr.mxu0 0.0
  %1330 = vmatpush1.msra.mxu0 0.0
  %1331 = vmatprep.subr.mxu0 0.0
  %1332 = vmatpush1.msra.mxu0 0.0
  %1333 = vmatprep.subr.mxu0 0.0
  %1334 = vmatpush1.msra.mxu0 0.0
  %1335 = vmatprep.mubr.f32.mxu0 0.0
  %1336 = vmatmul.mubr.f32.gmra.mrb[0].mxu0 %v1266
  %v1337 = vpop.f32.mrb[0].mxu0
  %v1338 = vadd.f32 0.0, %v1337
  %v1339 = vpop.f32.mrb[0].mxu0
  %1340 = vdwg.mxu0
  %v1341 = vadd.f32 %v1270, %v1338
  %v1342 = vtanh.pop %v1341
  %s1343 = scalar_lea.vmem [#allocation4], 32
  %1344 = vst [vmem:[%s1343] sm:$0xff] %v1342
  %s1345 = scalar_lea.vmem [#allocation3], 40
  %v1346 = vld [vmem:[%s1345] sm:$0xff]
  %1347 = vmatprep.subr.mxu0 0.0
  %1348 = vmatpush1.msra.mxu0 %v360
  %1349 = vmatprep.subr.mxu0 0.0
  %1350 = vmatpush1.msra.mxu0 %v361
  %1351 = vmatprep.subr.mxu0 0.0
  %1352 = vmatpush1.msra.mxu0 %v362
  %1353 = vmatprep.subr.mxu0 0.0
  %1354 = vmatpush1.msra.mxu0 %v363
  %1355 = vmatprep.subr.mxu0 0.0
  %1356 = vmatpush1.msra.mxu0 %v364
  %1357 = vmatprep.subr.mxu0 0.0
  %1358 = vmatpush1.msra.mxu0 %v365
  %1359 = vmatprep.subr.mxu0 0.0
  %1360 = vmatpush1.msra.mxu0 %v366
  %1361 = vmatprep.subr.mxu0 0.0
  %1362 = vmatpush1.msra.mxu0 %v367
  %1363 = vmatprep.subr.mxu0 0.0
  %1364 = vmatpush1.msra.mxu0 %v368
  %1365 = vmatprep.subr.mxu0 0.0
  %1366 = vmatpush1.msra.mxu0 %v369
  %1367 = vmatprep.subr.mxu0 0.0
  %1368 = vmatpush1.msra.mxu0 %v370
  %1369 = vmatprep.subr.mxu0 0.0
  %1370 = vmatpush1.msra.mxu0 %v371
  %1371 = vmatprep.subr.mxu0 0.0
  %1372 = vmatpush1.msra.mxu0 %v372
  %1373 = vmatprep.subr.mxu0 0.0
  %1374 = vmatpush1.msra.mxu0 %v373
  %1375 = vmatprep.subr.mxu0 0.0
  %1376 = vmatpush1.msra.mxu0 %v374
  %1377 = vmatprep.subr.mxu0 0.0
  %1378 = vmatpush1.msra.mxu0 %v375
  %1379 = vmatprep.subr.mxu0 0.0
  %1380 = vmatpush1.msra.mxu0 0.0
  %1381 = vmatprep.subr.mxu0 0.0
  %1382 = vmatpush1.msra.mxu0 0.0
  %1383 = vmatprep.subr.mxu0 0.0
  %1384 = vmatpush1.msra.mxu0 0.0
  %1385 = vmatprep.subr.mxu0 0.0
  %1386 = vmatpush1.msra.mxu0 0.0
  %1387 = vmatprep.subr.mxu0 0.0
  %1388 = vmatpush1.msra.mxu0 0.0
  %1389 = vmatprep.subr.mxu0 0.0
  %1390 = vmatpush1.msra.mxu0 0.0
  %1391 = vmatprep.subr.mxu0 0.0
  %1392 = vmatpush1.msra.mxu0 0.0
  %1393 = vmatprep.subr.mxu0 0.0
  %1394 = vmatpush1.msra.mxu0 0.0
  %1395 = vmatprep.subr.mxu0 0.0
  %1396 = vmatpush1.msra.mxu0 0.0
  %1397 = vmatprep.subr.mxu0 0.0
  %1398 = vmatpush1.msra.mxu0 0.0
  %1399 = vmatprep.subr.mxu0 0.0
  %1400 = vmatpush1.msra.mxu0 0.0
  %1401 = vmatprep.subr.mxu0 0.0
  %1402 = vmatpush1.msra.mxu0 0.0
  %1403 = vmatprep.subr.mxu0 0.0
  %1404 = vmatpush1.msra.mxu0 0.0
  %1405 = vmatprep.subr.mxu0 0.0
  %1406 = vmatpush1.msra.mxu0 0.0
  %1407 = vmatprep.subr.mxu0 0.0
  %1408 = vmatpush1.msra.mxu0 0.0
  %1409 = vmatprep.subr.mxu0 0.0
  %1410 = vmatpush1.msra.mxu0 0.0
  %1411 = vmatprep.mubr.f32.mxu0 0.0
  %1412 = vmatmul.mubr.f32.gmra.mrb[0].mxu0 %v1342
  %v1413 = vpop.f32.mrb[0].mxu0
  %v1414 = vadd.f32 0.0, %v1413
  %v1415 = vpop.f32.mrb[0].mxu0
  %1416 = vdwg.mxu0
  %v1417 = vadd.f32 %v1346, %v1414
  %v1418 = vtanh.pop %v1417
  %s1419 = scalar_lea.vmem [#allocation4], 40
  %1420 = vst [vmem:[%s1419] sm:$0xff] %v1418
  %s1421 = scalar_lea.vmem [#allocation3], 48
  %v1422 = vld [vmem:[%s1421] sm:$0xff]
  %1423 = vmatprep.subr.mxu0 0.0
  %1424 = vmatpush1.msra.mxu0 %v360
  %1425 = vmatprep.subr.mxu0 0.0
  %1426 = vmatpush1.msra.mxu0 %v361
  %1427 = vmatprep.subr.mxu0 0.0
  %1428 = vmatpush1.msra.mxu0 %v362
  %1429 = vmatprep.subr.mxu0 0.0
  %1430 = vmatpush1.msra.mxu0 %v363
  %1431 = vmatprep.subr.mxu0 0.0
  %1432 = vmatpush1.msra.mxu0 %v364
  %1433 = vmatprep.subr.mxu0 0.0
  %1434 = vmatpush1.msra.mxu0 %v365
  %1435 = vmatprep.subr.mxu0 0.0
  %1436 = vmatpush1.msra.mxu0 %v366
  %1437 = vmatprep.subr.mxu0 0.0
  %1438 = vmatpush1.msra.mxu0 %v367
  %1439 = vmatprep.subr.mxu0 0.0
  %1440 = vmatpush1.msra.mxu0 %v368
  %1441 = vmatprep.subr.mxu0 0.0
  %1442 = vmatpush1.msra.mxu0 %v369
  %1443 = vmatprep.subr.mxu0 0.0
  %1444 = vmatpush1.msra.mxu0 %v370
  %1445 = vmatprep.subr.mxu0 0.0
  %1446 = vmatpush1.msra.mxu0 %v371
  %1447 = vmatprep.subr.mxu0 0.0
  %1448 = vmatpush1.msra.mxu0 %v372
  %1449 = vmatprep.subr.mxu0 0.0
  %1450 = vmatpush1.msra.mxu0 %v373
  %1451 = vmatprep.subr.mxu0 0.0
  %1452 = vmatpush1.msra.mxu0 %v374
  %1453 = vmatprep.subr.mxu0 0.0
  %1454 = vmatpush1.msra.mxu0 %v375
  %1455 = vmatprep.subr.mxu0 0.0
  %1456 = vmatpush1.msra.mxu0 0.0
  %1457 = vmatprep.subr.mxu0 0.0
  %1458 = vmatpush1.msra.mxu0 0.0
  %1459 = vmatprep.subr.mxu0 0.0
  %1460 = vmatpush1.msra.mxu0 0.0
  %1461 = vmatprep.subr.mxu0 0.0
  %1462 = vmatpush1.msra.mxu0 0.0
  %1463 = vmatprep.subr.mxu0 0.0
  %1464 = vmatpush1.msra.mxu0 0.0
  %1465 = vmatprep.subr.mxu0 0.0
  %1466 = vmatpush1.msra.mxu0 0.0
  %1467 = vmatprep.subr.mxu0 0.0
  %1468 = vmatpush1.msra.mxu0 0.0
  %1469 = vmatprep.subr.mxu0 0.0
  %1470 = vmatpush1.msra.mxu0 0.0
  %1471 = vmatprep.subr.mxu0 0.0
  %1472 = vmatpush1.msra.mxu0 0.0
  %1473 = vmatprep.subr.mxu0 0.0
  %1474 = vmatpush1.msra.mxu0 0.0
  %1475 = vmatprep.subr.mxu0 0.0
  %1476 = vmatpush1.msra.mxu0 0.0
  %1477 = vmatprep.subr.mxu0 0.0
  %1478 = vmatpush1.msra.mxu0 0.0
  %1479 = vmatprep.subr.mxu0 0.0
  %1480 = vmatpush1.msra.mxu0 0.0
  %1481 = vmatprep.subr.mxu0 0.0
  %1482 = vmatpush1.msra.mxu0 0.0
  %1483 = vmatprep.subr.mxu0 0.0
  %1484 = vmatpush1.msra.mxu0 0.0
  %1485 = vmatprep.subr.mxu0 0.0
  %1486 = vmatpush1.msra.mxu0 0.0
  %1487 = vmatprep.mubr.f32.mxu0 0.0
  %1488 = vmatmul.mubr.f32.gmra.mrb[0].mxu0 %v1418
  %v1489 = vpop.f32.mrb[0].mxu0
  %v1490 = vadd.f32 0.0, %v1489
  %v1491 = vpop.f32.mrb[0].mxu0
  %1492 = vdwg.mxu0
  %v1493 = vadd.f32 %v1422, %v1490
  %v1494 = vtanh.pop %v1493
  %s1495 = scalar_lea.vmem [#allocation4], 48
  %1496 = vst [vmem:[%s1495] sm:$0xff] %v1494
  %s1497 = scalar_lea.vmem [#allocation3], 56
  %v1498 = vld [vmem:[%s1497] sm:$0xff]
  %1499 = vmatprep.subr.mxu0 0.0
  %1500 = vmatpush1.msra.mxu0 %v360
  %1501 = vmatprep.subr.mxu0 0.0
  %1502 = vmatpush1.msra.mxu0 %v361
  %1503 = vmatprep.subr.mxu0 0.0
  %1504 = vmatpush1.msra.mxu0 %v362
  %1505 = vmatprep.subr.mxu0 0.0
  %1506 = vmatpush1.msra.mxu0 %v363
  %1507 = vmatprep.subr.mxu0 0.0
  %1508 = vmatpush1.msra.mxu0 %v364
  %1509 = vmatprep.subr.mxu0 0.0
  %1510 = vmatpush1.msra.mxu0 %v365
  %1511 = vmatprep.subr.mxu0 0.0
  %1512 = vmatpush1.msra.mxu0 %v366
  %1513 = vmatprep.subr.mxu0 0.0
  %1514 = vmatpush1.msra.mxu0 %v367
  %1515 = vmatprep.subr.mxu0 0.0
  %1516 = vmatpush1.msra.mxu0 %v368
  %1517 = vmatprep.subr.mxu0 0.0
  %1518 = vmatpush1.msra.mxu0 %v369
  %1519 = vmatprep.subr.mxu0 0.0
  %1520 = vmatpush1.msra.mxu0 %v370
  %1521 = vmatprep.subr.mxu0 0.0
  %1522 = vmatpush1.msra.mxu0 %v371
  %1523 = vmatprep.subr.mxu0 0.0
  %1524 = vmatpush1.msra.mxu0 %v372
  %1525 = vmatprep.subr.mxu0 0.0
  %1526 = vmatpush1.msra.mxu0 %v373
  %1527 = vmatprep.subr.mxu0 0.0
  %1528 = vmatpush1.msra.mxu0 %v374
  %1529 = vmatprep.subr.mxu0 0.0
  %1530 = vmatpush1.msra.mxu0 %v375
  %1531 = vmatprep.subr.mxu0 0.0
  %1532 = vmatpush1.msra.mxu0 0.0
  %1533 = vmatprep.subr.mxu0 0.0
  %1534 = vmatpush1.msra.mxu0 0.0
  %1535 = vmatprep.subr.mxu0 0.0
  %1536 = vmatpush1.msra.mxu0 0.0
  %1537 = vmatprep.subr.mxu0 0.0
  %1538 = vmatpush1.msra.mxu0 0.0
  %1539 = vmatprep.subr.mxu0 0.0
  %1540 = vmatpush1.msra.mxu0 0.0
  %1541 = vmatprep.subr.mxu0 0.0
  %1542 = vmatpush1.msra.mxu0 0.0
  %1543 = vmatprep.subr.mxu0 0.0
  %1544 = vmatpush1.msra.mxu0 0.0
  %1545 = vmatprep.subr.mxu0 0.0
  %1546 = vmatpush1.msra.mxu0 0.0
  %1547 = vmatprep.subr.mxu0 0.0
  %1548 = vmatpush1.msra.mxu0 0.0
  %1549 = vmatprep.subr.mxu0 0.0
  %1550 = vmatpush1.msra.mxu0 0.0
  %1551 = vmatprep.subr.mxu0 0.0
  %1552 = vmatpush1.msra.mxu0 0.0
  %1553 = vmatprep.subr.mxu0 0.0
  %1554 = vmatpush1.msra.mxu0 0.0
  %1555 = vmatprep.subr.mxu0 0.0
  %1556 = vmatpush1.msra.mxu0 0.0
  %1557 = vmatprep.subr.mxu0 0.0
  %1558 = vmatpush1.msra.mxu0 0.0
  %1559 = vmatprep.subr.mxu0 0.0
  %1560 = vmatpush1.msra.mxu0 0.0
  %1561 = vmatprep.subr.mxu0 0.0
  %1562 = vmatpush1.msra.mxu0 0.0
  %1563 = vmatprep.mubr.f32.mxu0 0.0
  %1564 = vmatmul.mubr.f32.gmra.mrb[0].mxu0 %v1494
  %v1565 = vpop.f32.mrb[0].mxu0
  %v1566 = vadd.f32 0.0, %v1565
  %v1567 = vpop.f32.mrb[0].mxu0
  %1568 = vdwg.mxu0
  %v1569 = vadd.f32 %v1498, %v1566
  %v1570 = vtanh.pop %v1569
  %s1571 = scalar_lea.vmem [#allocation4], 56
  %1572 = vst [vmem:[%s1571] sm:$0xff] %v1570
  %v1573 = vld [vmem:[#allocation4] sm:$0xff]
  %v1574 = vld [vmem:[#allocation4 + $0x8] sm:$0xff]
  %v1575 = vld [vmem:[#allocation4 + $0x10] sm:$0xff]
  %v1576 = vld [vmem:[#allocation4 + $0x18] sm:$0xff]
  %v1577 = vld [vmem:[#allocation4 + $0x20] sm:$0xff]
  %v1578 = vld [vmem:[#allocation4 + $0x28] sm:$0xff]
  %v1579 = vld [vmem:[#allocation4 + $0x30] sm:$0xff]
  %v1580 = vld [vmem:[#allocation4 + $0x38] sm:$0xff]
  %v1581 = vld [vmem:[%s8] sm:$0xff]
  %v1582 = vld [vmem:[%s8 + $0x8] sm:$0xff]
  %v1583 = vld [vmem:[%s8 + $0x10] sm:$0xff]
  %v1584 = vld [vmem:[%s8 + $0x18] sm:$0xff]
  %v1585 = vld [vmem:[%s8 + $0x20] sm:$0xff]
  %v1586 = vld [vmem:[%s8 + $0x28] sm:$0xff]
  %v1587 = vld [vmem:[%s8 + $0x30] sm:$0xff]
  %v1588 = vld [vmem:[%s8 + $0x38] sm:$0xff]
  %v1589 = vld [vmem:[%s8 + $0x40] sm:$0xff]
  %v1590 = vld [vmem:[%s8 + $0x48] sm:$0xff]
  %v1591 = vld [vmem:[%s8 + $0x50] sm:$0xff]
  %v1592 = vld [vmem:[%s8 + $0x58] sm:$0xff]
  %v1593 = vld [vmem:[%s8 + $0x60] sm:$0xff]
  %v1594 = vld [vmem:[%s8 + $0x68] sm:$0xff]
  %v1595 = vld [vmem:[%s8 + $0x70] sm:$0xff]
  %v1596 = vld [vmem:[%s8 + $0x78] sm:$0xff]
  %v1597 = vld [vmem:[%s9] sm:$0x1]
  %v1599 = vlaneseq
  %v1600 = vshrl.u32 %v1599, 7
  %v1601 = vsub.s32 0, %v1600
  %v1602 = vrot.slane %v1597, %v1601
  %1604 = vmatprep.subr.mxu0 0.0
  %1605 = vmatpush1.msra.mxu0 %v1581
  %1606 = vmatprep.subr.mxu0 0.0
  %1607 = vmatpush1.msra.mxu0 %v1582
  %1608 = vmatprep.subr.mxu0 0.0
  %1609 = vmatpush1.msra.mxu0 %v1583
  %1610 = vmatprep.subr.mxu0 0.0
  %1611 = vmatpush1.msra.mxu0 %v1584
  %1612 = vmatprep.subr.mxu0 0.0
  %1613 = vmatpush1.msra.mxu0 %v1585
  %1614 = vmatprep.subr.mxu0 0.0
  %1615 = vmatpush1.msra.mxu0 %v1586
  %1616 = vmatprep.subr.mxu0 0.0
  %1617 = vmatpush1.msra.mxu0 %v1587
  %1618 = vmatprep.subr.mxu0 0.0
  %1619 = vmatpush1.msra.mxu0 %v1588
  %1620 = vmatprep.subr.mxu0 0.0
  %1621 = vmatpush1.msra.mxu0 %v1589
  %1622 = vmatprep.subr.mxu0 0.0
  %1623 = vmatpush1.msra.mxu0 %v1590
  %1624 = vmatprep.subr.mxu0 0.0
  %1625 = vmatpush1.msra.mxu0 %v1591
  %1626 = vmatprep.subr.mxu0 0.0
  %1627 = vmatpush1.msra.mxu0 %v1592
  %1628 = vmatprep.subr.mxu0 0.0
  %1629 = vmatpush1.msra.mxu0 %v1593
  %1630 = vmatprep.subr.mxu0 0.0
  %1631 = vmatpush1.msra.mxu0 %v1594
  %1632 = vmatprep.subr.mxu0 0.0
  %1633 = vmatpush1.msra.mxu0 %v1595
  %1634 = vmatprep.subr.mxu0 0.0
  %1635 = vmatpush1.msra.mxu0 %v1596
  %1636 = vmatprep.subr.mxu0 0.0
  %1637 = vmatpush1.msra.mxu0 0.0
  %1638 = vmatprep.subr.mxu0 0.0
  %1639 = vmatpush1.msra.mxu0 0.0
  %1640 = vmatprep.subr.mxu0 0.0
  %1641 = vmatpush1.msra.mxu0 0.0
  %1642 = vmatprep.subr.mxu0 0.0
  %1643 = vmatpush1.msra.mxu0 0.0
  %1644 = vmatprep.subr.mxu0 0.0
  %1645 = vmatpush1.msra.mxu0 0.0
  %1646 = vmatprep.subr.mxu0 0.0
  %1647 = vmatpush1.msra.mxu0 0.0
  %1648 = vmatprep.subr.mxu0 0.0
  %1649 = vmatpush1.msra.mxu0 0.0
  %1650 = vmatprep.subr.mxu0 0.0
  %1651 = vmatpush1.msra.mxu0 0.0
  %1652 = vmatprep.subr.mxu0 0.0
  %1653 = vmatpush1.msra.mxu0 0.0
  %1654 = vmatprep.subr.mxu0 0.0
  %1655 = vmatpush1.msra.mxu0 0.0
  %1656 = vmatprep.subr.mxu0 0.0
  %1657 = vmatpush1.msra.mxu0 0.0
  %1658 = vmatprep.subr.mxu0 0.0
  %1659 = vmatpush1.msra.mxu0 0.0
  %1660 = vmatprep.subr.mxu0 0.0
  %1661 = vmatpush1.msra.mxu0 0.0
  %1662 = vmatprep.subr.mxu0 0.0
  %1663 = vmatpush1.msra.mxu0 0.0
  %1664 = vmatprep.subr.mxu0 0.0
  %1665 = vmatpush1.msra.mxu0 0.0
  %1666 = vmatprep.subr.mxu0 0.0
  %1667 = vmatpush1.msra.mxu0 0.0
  %1668 = vmatprep.mubr.f32.mxu0 0.0
  %1669 = vmatmul.mubr.f32.gmra.mrb[0].mxu0 %v1573
  %v1670 = vpop.f32.mrb[0].mxu0
  %v1671 = vadd.f32 %v1602, %v1670
  %v1672 = vpop.f32.mrb[0].mxu0
  %1673 = vmatprep.mubr.f32.mxu0 0.0
  %1674 = vmatmul.mubr.f32.gmra.mrb[0].mxu0 %v1574
  %v1675 = vpop.f32.mrb[0].mxu0
  %v1676 = vadd.f32 %v1602, %v1675
  %v1677 = vpop.f32.mrb[0].mxu0
  %1678 = vmatprep.mubr.f32.mxu0 0.0
  %1679 = vmatmul.mubr.f32.gmra.mrb[0].mxu0 %v1575
  %v1680 = vpop.f32.mrb[0].mxu0
  %v1681 = vadd.f32 %v1602, %v1680
  %v1682 = vpop.f32.mrb[0].mxu0
  %1683 = vmatprep.mubr.f32.mxu0 0.0
  %1684 = vmatmul.mubr.f32.gmra.mrb[0].mxu0 %v1576
  %v1685 = vpop.f32.mrb[0].mxu0
  %v1686 = vadd.f32 %v1602, %v1685
  %v1687 = vpop.f32.mrb[0].mxu0
  %1688 = vmatprep.mubr.f32.mxu0 0.0
  %1689 = vmatmul.mubr.f32.gmra.mrb[0].mxu0 %v1577
  %v1690 = vpop.f32.mrb[0].mxu0
  %v1691 = vadd.f32 %v1602, %v1690
  %v1692 = vpop.f32.mrb[0].mxu0
  %1693 = vmatprep.mubr.f32.mxu0 0.0
  %1694 = vmatmul.mubr.f32.gmra.mrb[0].mxu0 %v1578
  %v1695 = vpop.f32.mrb[0].mxu0
  %v1696 = vadd.f32 %v1602, %v1695
  %v1697 = vpop.f32.mrb[0].mxu0
  %1698 = vmatprep.mubr.f32.mxu0 0.0
  %1699 = vmatmul.mubr.f32.gmra.mrb[0].mxu0 %v1579
  %v1700 = vpop.f32.mrb[0].mxu0
  %v1701 = vadd.f32 %v1602, %v1700
  %v1702 = vpop.f32.mrb[0].mxu0
  %1703 = vmatprep.mubr.f32.mxu0 0.0
  %1704 = vmatmul.mubr.f32.gmra.mrb[0].mxu0 %v1580
  %v1705 = vpop.f32.mrb[0].mxu0
  %v1706 = vadd.f32 %v1602, %v1705
  %v1707 = vpop.f32.mrb[0].mxu0
  %1708 = vdwg.mxu0
  %1709 = vmax.xlane.f32.xlu0 %v1671
  %v1710 = vpop.xlane.xlu0 %1709
  %1711 = vmax.xlane.f32.xlu0 %v1676
  %v1712 = vpop.xlane.xlu0 %1711
  %1713 = vmax.xlane.f32.xlu0 %v1681
  %v1714 = vpop.xlane.xlu0 %1713
  %1715 = vmax.xlane.f32.xlu0 %v1686
  %v1716 = vpop.xlane.xlu0 %1715
  %1717 = vmax.xlane.f32.xlu0 %v1691
  %v1718 = vpop.xlane.xlu0 %1717
  %1719 = vmax.xlane.f32.xlu0 %v1696
  %v1720 = vpop.xlane.xlu0 %1719
  %1721 = vmax.xlane.f32.xlu0 %v1701
  %v1722 = vpop.xlane.xlu0 %1721
  %1723 = vmax.xlane.f32.xlu0 %v1706
  %v1724 = vpop.xlane.xlu0 %1723
  %v1725 = vsub.f32 %v1671, %v1710
  %v1726 = vsub.f32 %v1676, %v1712
  %v1727 = vsub.f32 %v1681, %v1714
  %v1728 = vsub.f32 %v1686, %v1716
  %v1729 = vsub.f32 %v1691, %v1718
  %v1730 = vsub.f32 %v1696, %v1720
  %v1731 = vsub.f32 %v1701, %v1722
  %v1732 = vsub.f32 %v1706, %v1724
  %v1733 = vmul.f32 %v1725, 1.442695
  %v1734 = vpow.pop %v1733
  %v1735 = vmul.f32 %v1726, 1.442695
  %v1736 = vpow.pop %v1735
  %v1737 = vmul.f32 %v1727, 1.442695
  %v1738 = vpow.pop %v1737
  %v1739 = vmul.f32 %v1728, 1.442695
  %v1740 = vpow.pop %v1739
  %v1741 = vmul.f32 %v1729, 1.442695
  %v1742 = vpow.pop %v1741
  %v1743 = vmul.f32 %v1730, 1.442695
  %v1744 = vpow.pop %v1743
  %v1745 = vmul.f32 %v1731, 1.442695
  %v1746 = vpow.pop %v1745
  %v1747 = vmul.f32 %v1732, 1.442695
  %v1748 = vpow.pop %v1747
  %1749 = vadd.xlane.f32.xlu0 %v1734
  %v1750 = vpop.xlane.xlu0 %1749
  %1751 = vadd.xlane.f32.xlu0 %v1736
  %v1752 = vpop.xlane.xlu0 %1751
  %1753 = vadd.xlane.f32.xlu0 %v1738
  %v1754 = vpop.xlane.xlu0 %1753
  %1755 = vadd.xlane.f32.xlu0 %v1740
  %v1756 = vpop.xlane.xlu0 %1755
  %1757 = vadd.xlane.f32.xlu0 %v1742
  %v1758 = vpop.xlane.xlu0 %1757
  %1759 = vadd.xlane.f32.xlu0 %v1744
  %v1760 = vpop.xlane.xlu0 %1759
  %1761 = vadd.xlane.f32.xlu0 %v1746
  %v1762 = vpop.xlane.xlu0 %1761
  %1763 = vadd.xlane.f32.xlu0 %v1748
  %v1764 = vpop.xlane.xlu0 %1763
  %v1765 = vlog2.pop %v1750
  %v1766 = vmul.f32 %v1765, 0.6931472
  %v1767 = vlog2.pop %v1752
  %v1768 = vmul.f32 %v1767, 0.6931472
  %v1769 = vlog2.pop %v1754
  %v1770 = vmul.f32 %v1769, 0.6931472
  %v1771 = vlog2.pop %v1756
  %v1772 = vmul.f32 %v1771, 0.6931472
  %v1773 = vlog2.pop %v1758
  %v1774 = vmul.f32 %v1773, 0.6931472
  %v1775 = vlog2.pop %v1760
  %v1776 = vmul.f32 %v1775, 0.6931472
  %v1777 = vlog2.pop %v1762
  %v1778 = vmul.f32 %v1777, 0.6931472
  %v1779 = vlog2.pop %v1764
  %v1780 = vmul.f32 %v1779, 0.6931472
  %v1781 = vsub.f32 %v1725, %v1766
  %v1782 = vsub.f32 %v1726, %v1768
  %v1783 = vsub.f32 %v1727, %v1770
  %v1784 = vsub.f32 %v1728, %v1772
  %v1785 = vsub.f32 %v1729, %v1774
  %v1786 = vsub.f32 %v1730, %v1776
  %v1787 = vsub.f32 %v1731, %v1778
  %v1788 = vsub.f32 %v1732, %v1780
  %1789 = vst [vmem:[%s10] sm:$0xff] %v1781
  %1790 = vst [vmem:[%s10 + $0x8] sm:$0xff] %v1782
  %1791 = vst [vmem:[%s10 + $0x10] sm:$0xff] %v1783
  %1792 = vst [vmem:[%s10 + $0x18] sm:$0xff] %v1784
  %1793 = vst [vmem:[%s10 + $0x20] sm:$0xff] %v1785
  %1794 = vst [vmem:[%s10 + $0x28] sm:$0xff] %v1786
  %1795 = vst [vmem:[%s10 + $0x30] sm:$0xff] %v1787
  %1796 = vst [vmem:[%s10 + $0x38] sm:$0xff] %v1788
  // Predicated region
  $region42: #{s2s_forward.1} parent=0 // pred_check
    _
  $region43: #{s2s_forward.1} parent=0 // pred_check_branch
    %1798 = sbr.rel (0) target = $region45
  $region44: #{s2s_forward.1} parent=0 // pred_region
    _
  $region45: #{s2s_forward.1} parent=0 // pred_fallthru
    _
  // Predicated region
  $region46: #{s2s_forward.1} parent=0 // pred_check
    _
  $region47: #{s2s_forward.1} parent=0 // pred_check_branch
    %1800 = sbr.rel (0) target = $region49
  $region48: #{s2s_forward.1} parent=0 // pred_region
    _
  $region49: #{s2s_forward.1} parent=0 // pred_fallthru
    _

</llo_original>
